<compile_context>
chip_gen: v6e
topology: v6e:2x2x1
jax: 0.10.0
libtpu: 0.0.40
codegen_flags: <defaults>
</compile_context>

<pallas_src>
import functools

import jax
import jax.numpy as jnp
from jax.experimental import pallas as pl
from jax.experimental.pallas import tpu as pltpu

EPS = 1e-12


def _fused_spectral_norm_conv_kernel(x_ref, w2_ref, u_ref, b_ref,
                                     y_ref, u_out_ref, v_out_ref,
                                     patches_ref,
                                     *, H, W, KH, KW, Cin, Cout, B,
                                     power_iterations):
    HW = H * W

    # ------------------------------------------------------------------
    # 1) Power iteration + sigma (exact f32 on VPU/XLU; ~600 FLOPs).
    #    w2 is in tap-major (kh, kw, cin) column order; u and sigma are
    #    invariant to that permutation, v is un-permuted in the wrapper.
    # ------------------------------------------------------------------
    w2 = w2_ref[...].astype(jnp.float32)                   # (Cout, width)
    u = u_ref[...].astype(jnp.float32)                     # (Cout, 1)
    v = None
    for _ in range(power_iterations):
        v_raw = jnp.sum(w2 * u, axis=0, keepdims=True)     # w2.T @ u -> (1, width)
        v = v_raw * (1.0 / (jnp.sqrt(jnp.sum(v_raw * v_raw, keepdims=True)) + EPS))
        u_raw = jnp.sum(w2 * v, axis=1, keepdims=True)     # w2 @ v   -> (Cout, 1)
        u = u_raw * (1.0 / (jnp.sqrt(jnp.sum(u_raw * u_raw, keepdims=True)) + EPS))

    wv = jnp.sum(w2 * v, axis=1, keepdims=True)            # w2 @ v (final v)
    sigma = jnp.sum(u * wv, keepdims=True)                 # (1, 1)
    inv_sigma = 1.0 / sigma                                # exact divide

    # Batch-invariant outputs: same value every step, constant out index_map
    # -> one tiny HBM write-back per core.  Written unconditionally (no
    # pl.when) so a megacore grid split never flushes an uninitialized buffer.
    u_out_ref[...] = u.astype(u_out_ref.dtype)
    v_out_ref[...] = v.astype(v_out_ref.dtype)

    # ------------------------------------------------------------------
    # 2) im2col: each tap is a lane-roll of the register-resident image,
    #    masked at image edges with hoisted masks, stored as a contiguous
    #    Cin-row block of the patch matrix.
    # ------------------------------------------------------------------
    lin = jax.lax.broadcasted_iota(jnp.int32, (Cin, HW), 1)
    if W & (W - 1) == 0:                                   # W is a power of two
        col = lin & (W - 1)
        row = lin >> (W.bit_length() - 1)
    else:
        col = lin % W
        row = lin // W

    mask_h, mask_v = {}, {}
    for dw in range(-(KW // 2), KW - KW // 2):
        if dw > 0:
            mask_h[dw] = (col < (W - dw)).astype(jnp.float32)
        elif dw < 0:
            mask_h[dw] = (col >= (-dw)).astype(jnp.float32)
    for dh in range(-(KH // 2), KH - KH // 2):
        if dh > 0:
            mask_v[dh] = (row < (H - dh)).astype(jnp.float32)
        elif dh < 0:
            mask_v[dh] = (row >= (-dh)).astype(jnp.float32)

    tap_masks = []
    for kh in range(KH):
        for kw in range(KW):
            dh, dw = kh - KH // 2, kw - KW // 2
            m = None
            if dh != 0:
                m = mask_v[dh]
            if dw != 0:
                m = mask_h[dw] if m is None else m * mask_h[dw]
            tap_masks.append(m)

    for b in range(B):
        xb = x_ref[b].astype(jnp.float32)                  # (Cin, HW): 2 vregs
        for kh in range(KH):
            for kw in range(KW):
                t = kh * KW + kw
                off = (kh - KH // 2) * W + (kw - KW // 2)
                xs = xb if off == 0 else pltpu.roll(xb, shift=(-off) % HW, axis=1)
                m = tap_masks[t]
                if m is not None:
                    xs = xs * m
                patches_ref[pl.ds(t * Cin, Cin), pl.ds(b * HW, HW)] = xs

    # ------------------------------------------------------------------
    # 3) Conv as ONE MXU matmul on the un-normalized weight; 1/sigma is folded
    #    into the accumulator (conv is linear in the weight), bias added once.
    # ------------------------------------------------------------------
    acc = jnp.dot(w2, patches_ref[...],
                  precision=jax.lax.Precision.HIGHEST,
                  preferred_element_type=jnp.float32)      # (Cout, B*HW)
    y = acc * inv_sigma + b_ref[...].astype(jnp.float32)   # (Cout,1) broadcast add
    for b in range(B):
        y_ref[b] = y[:, b * HW:(b + 1) * HW].astype(y_ref.dtype)


def spectral_norm_conv_forward(x, w_bar, bias, u, v, *,
                               power_iterations=1, images_per_step=1):
    """Forward of SpectralNorm(Conv2d(Cin, Cout, K, stride=1, padding=K//2)).

    x: (N, Cin, H, W) NCHW;  w_bar: (Cout, Cin, KH, KW);  bias: (Cout,)
    u: (Cout,);  v: (Cin*KH*KW,) -- v is never read by the forward math
    (it is always recomputed from u, power_iterations>=1), matching PyTorch.
    images_per_step: images packed per grid step (1 -> grid=(N,), best for
    dual-TC v7x; N -> single step, best for single-TC v5e/v6e).
    Returns (y NCHW, u_new, v_new).
    """
    assert power_iterations >= 1
    N, Cin, H, W = x.shape
    Cout, _, KH, KW = w_bar.shape
    HW = H * W
    width = Cin * KH * KW
    B = images_per_step
    assert N % B == 0

    # Wrapper glue: free reshapes + a tiny (8 x 36) weight-column permutation.
    x_flat = x.reshape(N, Cin, HW)
    w2_tap = jnp.transpose(w_bar, (0, 2, 3, 1)).reshape(Cout, width)  # (kh,kw,cin)
    u_col = u.reshape(Cout, 1)
    b_col = bias.reshape(Cout, 1)

    kernel = functools.partial(
        _fused_spectral_norm_conv_kernel,
        H=H, W=W, KH=KH, KW=KW, Cin=Cin, Cout=Cout, B=B,
        power_iterations=power_iterations)

    y_flat, u_new, v_tap = pl.pallas_call(
        kernel,
        grid=(N // B,),
        in_specs=[
            pl.BlockSpec((B, Cin, HW), lambda g: (g, 0, 0)),    # x (B images/step)
            pl.BlockSpec((Cout, width), lambda g: (0, 0)),      # w2 (resident)
            pl.BlockSpec((Cout, 1), lambda g: (0, 0)),          # u
            pl.BlockSpec((Cout, 1), lambda g: (0, 0)),          # bias
        ],
        out_specs=(
            pl.BlockSpec((B, Cout, HW), lambda g: (g, 0, 0)),   # y (lane-dense)
            pl.BlockSpec((Cout, 1), lambda g: (0, 0)),          # u_new (batch-invariant)
            pl.BlockSpec((1, width), lambda g: (0, 0)),         # v_new (batch-invariant)
        ),
        out_shape=(
            jax.ShapeDtypeStruct((N, Cout, HW), x.dtype),
            jax.ShapeDtypeStruct((Cout, 1), u.dtype),
            jax.ShapeDtypeStruct((1, width), v.dtype),
        ),
        scratch_shapes=[pltpu.VMEM((width, B * HW), jnp.float32)],  # im2col patches
        compiler_params=pltpu.CompilerParams(
            dimension_semantics=("parallel",)),
    )(x_flat, w2_tap, u_col, b_col)

    y = y_flat.reshape(N, Cout, H, W)
    # Un-permute v from tap-major (kh, kw, cin) back to PyTorch's (cin, kh, kw).
    v_new = v_tap[0].reshape(KH, KW, Cin).transpose(2, 0, 1).reshape(width)
    return y, u_new[:, 0], v_new


def _l2_normalize(t, eps=EPS):
    return t / (jnp.linalg.norm(t) + eps)


if __name__ == "__main__":
    N, Cin, H, W = 2, 4, 16, 16
    Cout, K = 8, 3

    key = jax.random.PRNGKey(0)
    k_w, k_b, k_u, k_v, k_x = jax.random.split(key, 5)
    w_bar = jax.random.normal(k_w, (Cout, Cin, K, K), jnp.float32) * 0.1
    bias = jax.random.normal(k_b, (Cout,), jnp.float32) * 0.1
    u0 = _l2_normalize(jax.random.normal(k_u, (Cout,), jnp.float32))
    v0 = _l2_normalize(jax.random.normal(k_v, (Cin * K * K,), jnp.float32))
    x = jax.random.normal(k_x, (N, Cin, H, W), jnp.float32)

    # Default path: 1 image per step, grid=(N,) "parallel" (v7x megacore).
    fwd = jax.jit(spectral_norm_conv_forward)
    y, u1, v1 = fwd(x, w_bar, bias, u0, v0)
    # Packed path: all images in one step (single-TC v5e/v6e configuration).
    fwd_packed = jax.jit(functools.partial(spectral_norm_conv_forward,
                                           images_per_step=N))
    y2, u2, v2 = fwd_packed(x, w_bar, bias, u0, v0)
    jax.block_until_ready((y, u1, v1, y2, u2, v2))

    # Plain-JAX reference (f32, HIGHEST precision) for a sanity check.
    hp = jax.lax.Precision.HIGHEST
    w2 = w_bar.reshape(Cout, -1)
    v_r = _l2_normalize(jnp.einsum("ok,o->k", w2, u0, precision=hp))
    u_r = _l2_normalize(jnp.einsum("ok,k->o", w2, v_r, precision=hp))
    sigma = jnp.einsum("o,o->", u_r,
                       jnp.einsum("ok,k->o", w2, v_r, precision=hp),
                       precision=hp)
    w_ref = w_bar / sigma
    y_ref = jax.lax.conv_general_dilated(
        x, w_ref, window_strides=(1, 1), padding="SAME",
        dimension_numbers=("NCHW", "OIHW", "NCHW"),
        precision=hp) + bias[None, :, None, None]

    ok = (jnp.allclose(y, y_ref, atol=1e-3, rtol=1e-3)
          and jnp.allclose(y2, y_ref, atol=1e-3, rtol=1e-3)
          and jnp.allclose(u1, u_r, atol=1e-4) and jnp.allclose(u2, u_r, atol=1e-4)
          and jnp.allclose(v1, v_r, atol=1e-4) and jnp.allclose(v2, v_r, atol=1e-4))
    if not ok:
        raise AssertionError("Pallas SpectralNorm output mismatch vs JAX reference")
    print("KERNEL_OK")
</pallas_src>

<mosaic_0001>
module attributes {stable_mosaic.version = 11 : i64} {
  func.func @_fused_spectral_norm_conv_kernel(%arg0: i32, %arg1: memref<1x4x256xf32, #tpu.memory_space<vmem>>, %arg2: memref<8x36xf32, #tpu.memory_space<vmem>>, %arg3: memref<8x1xf32, #tpu.memory_space<vmem>>, %arg4: memref<8x1xf32, #tpu.memory_space<vmem>>, %arg5: memref<1x8x256xf32, #tpu.memory_space<vmem>>, %arg6: memref<8x1xf32, #tpu.memory_space<vmem>>, %arg7: memref<1x36xf32, #tpu.memory_space<vmem>>, %arg8: memref<36x256xf32, #tpu.memory_space<vmem>>) attributes {dimension_semantics = [#tpu.dimension_semantics<parallel>], iteration_bounds = array<i64: 2>, scalar_prefetch = 0 : i64, scratch_operands = 1 : i64, tpu.core_type = #tpu.core_type<tc>, window_params = [{transform_indices = @transform_0, window_bounds = array<i64: 1, 4, 256>}, {pipeline_mode = #tpu.pipeline_mode<synchronous>, transform_indices = @transform_1, window_bounds = array<i64: 8, 36>}, {pipeline_mode = #tpu.pipeline_mode<synchronous>, transform_indices = @transform_2, window_bounds = array<i64: 8, 1>}, {pipeline_mode = #tpu.pipeline_mode<synchronous>, transform_indices = @transform_3, window_bounds = array<i64: 8, 1>}, {transform_indices = @transform_4, window_bounds = array<i64: 1, 8, 256>}, {pipeline_mode = #tpu.pipeline_mode<synchronous>, transform_indices = @transform_5, window_bounds = array<i64: 8, 1>}, {pipeline_mode = #tpu.pipeline_mode<synchronous>, transform_indices = @transform_6, window_bounds = array<i64: 1, 36>}]} {
    %c0 = arith.constant 0 : index
    %c0_0 = arith.constant 0 : index
    %0 = vector.load %arg2[%c0, %c0_0] : memref<8x36xf32, #tpu.memory_space<vmem>>, vector<8x36xf32>
    %c0_1 = arith.constant 0 : index
    %c0_2 = arith.constant 0 : index
    %1 = vector.load %arg3[%c0_1, %c0_2] : memref<8x1xf32, #tpu.memory_space<vmem>>, vector<8x1xf32>
    %2 = vector.broadcast %1 : vector<8x1xf32> to vector<8x36xf32>
    %3 = arith.mulf %0, %2 : vector<8x36xf32>
    %cst = arith.constant dense<0.000000e+00> : vector<36xf32>
    %4 = vector.multi_reduction <add>, %3, %cst [0] : vector<8x36xf32> to vector<36xf32>
    %5 = vector.shape_cast %4 : vector<36xf32> to vector<1x36xf32>
    %6 = arith.mulf %5, %5 : vector<1x36xf32>
    %7 = vector.shape_cast %6 : vector<1x36xf32> to vector<1x1x36xf32>
    %cst_3 = arith.constant dense<0.000000e+00> : vector<1xf32>
    %8 = vector.multi_reduction <add>, %7, %cst_3 [1, 2] : vector<1x1x36xf32> to vector<1xf32>
    %9 = vector.shape_cast %8 : vector<1xf32> to vector<1x1x1xf32>
    %10 = vector.extract %9[0, 0, 0] : f32 from vector<1x1x1xf32>
    %11 = vector.broadcast %10 : f32 to vector<1x1xf32>
    %12 = math.sqrt %11 : vector<1x1xf32>
    %cst_4 = arith.constant 9.99999996E-13 : f32
    %13 = vector.broadcast %cst_4 : f32 to vector<1x1xf32>
    %14 = arith.addf %12, %13 : vector<1x1xf32>
    %cst_5 = arith.constant 1.000000e+00 : f32
    %15 = vector.broadcast %cst_5 : f32 to vector<1x1xf32>
    %16 = arith.divf %15, %14 : vector<1x1xf32>
    %17 = vector.broadcast %16 : vector<1x1xf32> to vector<1x36xf32>
    %18 = arith.mulf %5, %17 : vector<1x36xf32>
    %19 = vector.broadcast %18 : vector<1x36xf32> to vector<8x36xf32>
    %20 = arith.mulf %0, %19 : vector<8x36xf32>
    %cst_6 = arith.constant dense<0.000000e+00> : vector<8xf32>
    %21 = vector.multi_reduction <add>, %20, %cst_6 [1] : vector<8x36xf32> to vector<8xf32>
    %22 = vector.shape_cast %21 : vector<8xf32> to vector<8x1xf32>
    %23 = arith.mulf %22, %22 : vector<8x1xf32>
    %24 = vector.shape_cast %23 : vector<8x1xf32> to vector<1x8x1xf32>
    %cst_7 = arith.constant dense<0.000000e+00> : vector<1xf32>
    %25 = vector.multi_reduction <add>, %24, %cst_7 [1, 2] : vector<1x8x1xf32> to vector<1xf32>
    %26 = vector.shape_cast %25 : vector<1xf32> to vector<1x1x1xf32>
    %27 = vector.extract %26[0, 0, 0] : f32 from vector<1x1x1xf32>
    %28 = vector.broadcast %27 : f32 to vector<1x1xf32>
    %29 = math.sqrt %28 : vector<1x1xf32>
    %cst_8 = arith.constant 9.99999996E-13 : f32
    %30 = vector.broadcast %cst_8 : f32 to vector<1x1xf32>
    %31 = arith.addf %29, %30 : vector<1x1xf32>
    %cst_9 = arith.constant 1.000000e+00 : f32
    %32 = vector.broadcast %cst_9 : f32 to vector<1x1xf32>
    %33 = arith.divf %32, %31 : vector<1x1xf32>
    %34 = vector.broadcast %33 : vector<1x1xf32> to vector<8x1xf32>
    %35 = arith.mulf %22, %34 : vector<8x1xf32>
    %36 = vector.broadcast %18 : vector<1x36xf32> to vector<8x36xf32>
    %37 = arith.mulf %0, %36 : vector<8x36xf32>
    %cst_10 = arith.constant dense<0.000000e+00> : vector<8xf32>
    %38 = vector.multi_reduction <add>, %37, %cst_10 [1] : vector<8x36xf32> to vector<8xf32>
    %39 = vector.shape_cast %38 : vector<8xf32> to vector<8x1xf32>
    %40 = arith.mulf %35, %39 : vector<8x1xf32>
    %41 = vector.shape_cast %40 : vector<8x1xf32> to vector<1x8x1xf32>
    %cst_11 = arith.constant dense<0.000000e+00> : vector<1xf32>
    %42 = vector.multi_reduction <add>, %41, %cst_11 [1, 2] : vector<1x8x1xf32> to vector<1xf32>
    %43 = vector.shape_cast %42 : vector<1xf32> to vector<1x1x1xf32>
    %44 = vector.extract %43[0, 0, 0] : f32 from vector<1x1x1xf32>
    %45 = vector.broadcast %44 : f32 to vector<1x1xf32>
    %cst_12 = arith.constant 1.000000e+00 : f32
    %46 = vector.broadcast %cst_12 : f32 to vector<1x1xf32>
    %47 = arith.divf %46, %45 : vector<1x1xf32>
    %c0_13 = arith.constant 0 : index
    %c0_14 = arith.constant 0 : index
    %48 = vector.load %arg6[%c0_13, %c0_14] : memref<8x1xf32, #tpu.memory_space<vmem>>, vector<8x1xf32>
    tpu.vector_store %arg6[%c0_13, %c0_14], %35 {strides = array<i32>} : memref<8x1xf32, #tpu.memory_space<vmem>>, vector<8x1xf32>,
    %c0_15 = arith.constant 0 : index
    %c0_16 = arith.constant 0 : index
    %49 = vector.load %arg7[%c0_15, %c0_16] : memref<1x36xf32, #tpu.memory_space<vmem>>, vector<1x36xf32>
    tpu.vector_store %arg7[%c0_15, %c0_16], %18 {strides = array<i32>} : memref<1x36xf32, #tpu.memory_space<vmem>>, vector<1x36xf32>,
    %50 = tpu.iota {dimensions = array<i32: 1>} : vector<4x256xi32>
    %c15_i32 = arith.constant 15 : i32
    %51 = vector.broadcast %c15_i32 : i32 to vector<4x256xi32>
    %52 = arith.andi %50, %51 : vector<4x256xi32>
    %c4_i32 = arith.constant 4 : i32
    %53 = vector.broadcast %c4_i32 : i32 to vector<4x256xi32>
    %54 = arith.shrsi %50, %53 : vector<4x256xi32>
    %c1_i32 = arith.constant 1 : i32
    %55 = vector.broadcast %c1_i32 : i32 to vector<4x256xi32>
    %56 = arith.cmpi sge, %52, %55 : vector<4x256xi32>
    %57 = arith.extui %56 : vector<4x256xi1> to vector<4x256xi32>
    %58 = arith.sitofp %57 : vector<4x256xi32> to vector<4x256xf32>
    %c15_i32_17 = arith.constant 15 : i32
    %59 = vector.broadcast %c15_i32_17 : i32 to vector<4x256xi32>
    %60 = arith.cmpi slt, %52, %59 : vector<4x256xi32>
    %61 = arith.extui %60 : vector<4x256xi1> to vector<4x256xi32>
    %62 = arith.sitofp %61 : vector<4x256xi32> to vector<4x256xf32>
    %c1_i32_18 = arith.constant 1 : i32
    %63 = vector.broadcast %c1_i32_18 : i32 to vector<4x256xi32>
    %64 = arith.cmpi sge, %54, %63 : vector<4x256xi32>
    %65 = arith.extui %64 : vector<4x256xi1> to vector<4x256xi32>
    %66 = arith.sitofp %65 : vector<4x256xi32> to vector<4x256xf32>
    %c15_i32_19 = arith.constant 15 : i32
    %67 = vector.broadcast %c15_i32_19 : i32 to vector<4x256xi32>
    %68 = arith.cmpi slt, %54, %67 : vector<4x256xi32>
    %69 = arith.extui %68 : vector<4x256xi1> to vector<4x256xi32>
    %70 = arith.sitofp %69 : vector<4x256xi32> to vector<4x256xf32>
    %71 = arith.mulf %66, %58 : vector<4x256xf32>
    %72 = arith.mulf %66, %62 : vector<4x256xf32>
    %73 = arith.mulf %70, %58 : vector<4x256xf32>
    %74 = arith.mulf %70, %62 : vector<4x256xf32>
    %c0_20 = arith.constant 0 : index
    %c0_21 = arith.constant 0 : index
    %c0_22 = arith.constant 0 : index
    %75 = vector.load %arg1[%c0_20, %c0_21, %c0_22] : memref<1x4x256xf32, #tpu.memory_space<vmem>>, vector<1x4x256xf32>
    %76 = vector.shape_cast %75 : vector<1x4x256xf32> to vector<4x256xf32>
    %c17_i32 = arith.constant 17 : i32
    %77 = tpu.dynamic_rotate %76 by %c17_i32 dim 1 : vector<4x256xf32>, i32 -> vector<4x256xf32>
    %78 = arith.mulf %77, %71 : vector<4x256xf32>
    %c0_23 = arith.constant 0 : index
    %c0_24 = arith.constant 0 : index
    %79 = vector.load %arg8[%c0_23, %c0_24] : memref<36x256xf32, #tpu.memory_space<vmem>>, vector<4x256xf32>
    tpu.vector_store %arg8[%c0_23, %c0_24], %78 {strides = array<i32>} : memref<36x256xf32, #tpu.memory_space<vmem>>, vector<4x256xf32>,
    %c16_i32 = arith.constant 16 : i32
    %80 = tpu.dynamic_rotate %76 by %c16_i32 dim 1 : vector<4x256xf32>, i32 -> vector<4x256xf32>
    %81 = arith.mulf %80, %66 : vector<4x256xf32>
    %c4 = arith.constant 4 : index
    %c0_25 = arith.constant 0 : index
    %82 = vector.load %arg8[%c4, %c0_25] : memref<36x256xf32, #tpu.memory_space<vmem>>, vector<4x256xf32>
    tpu.vector_store %arg8[%c4, %c0_25], %81 {strides = array<i32>} : memref<36x256xf32, #tpu.memory_space<vmem>>, vector<4x256xf32>,
    %c15_i32_26 = arith.constant 15 : i32
    %83 = tpu.dynamic_rotate %76 by %c15_i32_26 dim 1 : vector<4x256xf32>, i32 -> vector<4x256xf32>
    %84 = arith.mulf %83, %72 : vector<4x256xf32>
    %c8 = arith.constant 8 : index
    %c0_27 = arith.constant 0 : index
    %85 = vector.load %arg8[%c8, %c0_27] : memref<36x256xf32, #tpu.memory_space<vmem>>, vector<4x256xf32>
    tpu.vector_store %arg8[%c8, %c0_27], %84 {strides = array<i32>} : memref<36x256xf32, #tpu.memory_space<vmem>>, vector<4x256xf32>,
    %c1_i32_28 = arith.constant 1 : i32
    %86 = tpu.dynamic_rotate %76 by %c1_i32_28 dim 1 : vector<4x256xf32>, i32 -> vector<4x256xf32>
    %87 = arith.mulf %86, %58 : vector<4x256xf32>
    %c12 = arith.constant 12 : index
    %c0_29 = arith.constant 0 : index
    %88 = vector.load %arg8[%c12, %c0_29] : memref<36x256xf32, #tpu.memory_space<vmem>>, vector<4x256xf32>
    tpu.vector_store %arg8[%c12, %c0_29], %87 {strides = array<i32>} : memref<36x256xf32, #tpu.memory_space<vmem>>, vector<4x256xf32>,
    %c16 = arith.constant 16 : index
    %c0_30 = arith.constant 0 : index
    %89 = vector.load %arg8[%c16, %c0_30] : memref<36x256xf32, #tpu.memory_space<vmem>>, vector<4x256xf32>
    tpu.vector_store %arg8[%c16, %c0_30], %76 {strides = array<i32>} : memref<36x256xf32, #tpu.memory_space<vmem>>, vector<4x256xf32>,
    %c255_i32 = arith.constant 255 : i32
    %90 = tpu.dynamic_rotate %76 by %c255_i32 dim 1 : vector<4x256xf32>, i32 -> vector<4x256xf32>
    %91 = arith.mulf %90, %62 : vector<4x256xf32>
    %c20 = arith.constant 20 : index
    %c0_31 = arith.constant 0 : index
    %92 = vector.load %arg8[%c20, %c0_31] : memref<36x256xf32, #tpu.memory_space<vmem>>, vector<4x256xf32>
    tpu.vector_store %arg8[%c20, %c0_31], %91 {strides = array<i32>} : memref<36x256xf32, #tpu.memory_space<vmem>>, vector<4x256xf32>,
    %c241_i32 = arith.constant 241 : i32
    %93 = tpu.dynamic_rotate %76 by %c241_i32 dim 1 : vector<4x256xf32>, i32 -> vector<4x256xf32>
    %94 = arith.mulf %93, %73 : vector<4x256xf32>
    %c24 = arith.constant 24 : index
    %c0_32 = arith.constant 0 : index
    %95 = vector.load %arg8[%c24, %c0_32] : memref<36x256xf32, #tpu.memory_space<vmem>>, vector<4x256xf32>
    tpu.vector_store %arg8[%c24, %c0_32], %94 {strides = array<i32>} : memref<36x256xf32, #tpu.memory_space<vmem>>, vector<4x256xf32>,
    %c240_i32 = arith.constant 240 : i32
    %96 = tpu.dynamic_rotate %76 by %c240_i32 dim 1 : vector<4x256xf32>, i32 -> vector<4x256xf32>
    %97 = arith.mulf %96, %70 : vector<4x256xf32>
    %c28 = arith.constant 28 : index
    %c0_33 = arith.constant 0 : index
    %98 = vector.load %arg8[%c28, %c0_33] : memref<36x256xf32, #tpu.memory_space<vmem>>, vector<4x256xf32>
    tpu.vector_store %arg8[%c28, %c0_33], %97 {strides = array<i32>} : memref<36x256xf32, #tpu.memory_space<vmem>>, vector<4x256xf32>,
    %c239_i32 = arith.constant 239 : i32
    %99 = tpu.dynamic_rotate %76 by %c239_i32 dim 1 : vector<4x256xf32>, i32 -> vector<4x256xf32>
    %100 = arith.mulf %99, %74 : vector<4x256xf32>
    %c32 = arith.constant 32 : index
    %c0_34 = arith.constant 0 : index
    %101 = vector.load %arg8[%c32, %c0_34] : memref<36x256xf32, #tpu.memory_space<vmem>>, vector<4x256xf32>
    tpu.vector_store %arg8[%c32, %c0_34], %100 {strides = array<i32>} : memref<36x256xf32, #tpu.memory_space<vmem>>, vector<4x256xf32>,
    %c0_35 = arith.constant 0 : index
    %c0_36 = arith.constant 0 : index
    %102 = vector.load %arg8[%c0_35, %c0_36] : memref<36x256xf32, #tpu.memory_space<vmem>>, vector<36x256xf32>
    %cst_37 = arith.constant dense<0.000000e+00> : vector<8x256xf32>
    %103 = tpu.matmul %0, %102, %cst_37 {dimension_numbers = #tpu.dot_dimension_numbers<[1], [0], [0], [1], [0, 0, 1, 1], [], []>, precision = #tpu.contract_precision<fp32>} : vector<8x36xf32>, vector<36x256xf32>, vector<8x256xf32> -> vector<8x256xf32>
    %104 = vector.broadcast %47 : vector<1x1xf32> to vector<8x256xf32>
    %105 = arith.mulf %103, %104 : vector<8x256xf32>
    %c0_38 = arith.constant 0 : index
    %c0_39 = arith.constant 0 : index
    %106 = vector.load %arg4[%c0_38, %c0_39] : memref<8x1xf32, #tpu.memory_space<vmem>>, vector<8x1xf32>
    %107 = vector.broadcast %106 : vector<8x1xf32> to vector<8x256xf32>
    %108 = arith.addf %105, %107 : vector<8x256xf32>
    %c0_40 = arith.constant 0 : index
    %c0_41 = arith.constant 0 : index
    %c0_42 = arith.constant 0 : index
    %109 = vector.load %arg5[%c0_40, %c0_41, %c0_42] : memref<1x8x256xf32, #tpu.memory_space<vmem>>, vector<1x8x256xf32>
    %110 = vector.shape_cast %109 : vector<1x8x256xf32> to vector<8x256xf32>
    %111 = vector.shape_cast %108 : vector<8x256xf32> to vector<1x8x256xf32>
    tpu.vector_store %arg5[%c0_40, %c0_41, %c0_42], %111 {strides = array<i32>} : memref<1x8x256xf32, #tpu.memory_space<vmem>>, vector<1x8x256xf32>,
    return
  }
  func.func @transform_0(%arg0: i32) -> (i32, i32, i32) {
    %c0_i32 = arith.constant 0 : i32
    %c0_i32_0 = arith.constant 0 : i32
    %c0_i32_1 = arith.constant 0 : i32
    return %arg0, %c0_i32, %c0_i32_0 : i32, i32, i32
  }
  func.func @transform_1(%arg0: i32) -> (i32, i32) {
    %c0_i32 = arith.constant 0 : i32
    %c0_i32_0 = arith.constant 0 : i32
    %c0_i32_1 = arith.constant 0 : i32
    return %c0_i32, %c0_i32_0 : i32, i32
  }
  func.func @transform_2(%arg0: i32) -> (i32, i32) {
    %c0_i32 = arith.constant 0 : i32
    %c0_i32_0 = arith.constant 0 : i32
    %c0_i32_1 = arith.constant 0 : i32
    return %c0_i32, %c0_i32_0 : i32, i32
  }
  func.func @transform_3(%arg0: i32) -> (i32, i32) {
    %c0_i32 = arith.constant 0 : i32
    %c0_i32_0 = arith.constant 0 : i32
    %c0_i32_1 = arith.constant 0 : i32
    return %c0_i32, %c0_i32_0 : i32, i32
  }
  func.func @transform_4(%arg0: i32) -> (i32, i32, i32) {
    %c0_i32 = arith.constant 0 : i32
    %c0_i32_0 = arith.constant 0 : i32
    %c0_i32_1 = arith.constant 0 : i32
    return %arg0, %c0_i32, %c0_i32_0 : i32, i32, i32
  }
  func.func @transform_5(%arg0: i32) -> (i32, i32) {
    %c0_i32 = arith.constant 0 : i32
    %c0_i32_0 = arith.constant 0 : i32
    %c0_i32_1 = arith.constant 0 : i32
    return %c0_i32, %c0_i32_0 : i32, i32
  }
  func.func @transform_6(%arg0: i32) -> (i32, i32) {
    %c0_i32 = arith.constant 0 : i32
    %c0_i32_0 = arith.constant 0 : i32
    %c0_i32_1 = arith.constant 0 : i32
    return %c0_i32, %c0_i32_0 : i32, i32
  }
}

</mosaic_0001>

<llo_original>
// kernel: squeeze.2
$region0: #{squeeze.2}
  %s0 = inlined_call_operand.vmem [shape: f32[36], index: 0, kind: input, shape index: {}]
  %s1 = inlined_call_operand.vmem [shape: f32[3,3,4], index: 1, kind: output, shape index: {}]
  $region1: #{squeeze.2} parent=0
    #allocation0 [shape = 'u8[12288]{0}', space=vmem, size = 0x3000, scoped, tag = 'scoped mem for output reshape']
    #allocation1 [shape = 'u8[4096]{0}', space=vmem, size = 0x1000, scoped, tag = 'scoped mem for input reshape']
    %s3 = sshll.u32 1, 1
    %s4 = ssub.s32 %s3, 1
    %v5 = vld [vmem:[%s0] sm:%s4]
    %6 = vst [vmem:[#allocation1] sm:%s4] %v5
    %v7 = vld [vmem:[#allocation1] sm:$0x1]
    %vm8 = vcmask 31744
    %9 = vst.msk [vmem:[#allocation0] sm:$0x1] %vm8, %v7
    %v10 = vld [vmem:[#allocation1] sm:$0x1]
    %11 = vrot.lane.b32.xlu0 %v10, 124
    %v12 = vpop.permute.xlu0 %11
    %vm13 = vcmask 31744
    %s14 = scalar_lea.vmem [#allocation0], 1
    %15 = vst.msk [vmem:[%s14] sm:$0x1] %vm13, %v12
    %v16 = vld [vmem:[#allocation1] sm:$0x1]
    %17 = vrot.lane.b32.xlu0 %v16, 120
    %v18 = vpop.permute.xlu0 %17
    %vm19 = vcmask 31744
    %s20 = scalar_lea.vmem [#allocation0], 2
    %21 = vst.msk [vmem:[%s20] sm:$0x1] %vm19, %v18
    %v22 = vld [vmem:[#allocation1] sm:$0x1]
    %23 = vrot.lane.b32.xlu0 %v22, 116
    %v24 = vpop.permute.xlu0 %23
    %vm25 = vcmask 31744
    %s26 = scalar_lea.vmem [#allocation0], 8
    %27 = vst.msk [vmem:[%s26] sm:$0x1] %vm25, %v24
    %v28 = vld [vmem:[#allocation1] sm:$0x1]
    %29 = vrot.lane.b32.xlu0 %v28, 112
    %v30 = vpop.permute.xlu0 %29
    %vm31 = vcmask 31744
    %s32 = scalar_lea.vmem [#allocation0], 9
    %33 = vst.msk [vmem:[%s32] sm:$0x1] %vm31, %v30
    %v34 = vld [vmem:[#allocation1] sm:$0x1]
    %35 = vrot.lane.b32.xlu0 %v34, 108
    %v36 = vpop.permute.xlu0 %35
    %vm37 = vcmask 31744
    %s38 = scalar_lea.vmem [#allocation0], 10
    %39 = vst.msk [vmem:[%s38] sm:$0x1] %vm37, %v36
    %v40 = vld [vmem:[#allocation1] sm:$0x1]
    %41 = vrot.lane.b32.xlu0 %v40, 104
    %v42 = vpop.permute.xlu0 %41
    %vm43 = vcmask 31744
    %s44 = scalar_lea.vmem [#allocation0], 16
    %45 = vst.msk [vmem:[%s44] sm:$0x1] %vm43, %v42
    %v46 = vld [vmem:[#allocation1] sm:$0x1]
    %47 = vrot.lane.b32.xlu0 %v46, 100
    %v48 = vpop.permute.xlu0 %47
    %vm49 = vcmask 31744
    %s50 = scalar_lea.vmem [#allocation0], 17
    %51 = vst.msk [vmem:[%s50] sm:$0x1] %vm49, %v48
    %v52 = vld [vmem:[#allocation1] sm:$0x1]
    %53 = vrot.lane.b32.xlu0 %v52, 96
    %v54 = vpop.permute.xlu0 %53
    %vm55 = vcmask 31744
    %s56 = scalar_lea.vmem [#allocation0], 18
    %57 = vst.msk [vmem:[%s56] sm:$0x1] %vm55, %v54
    %s59 = sshll.u32 1, 4
    %s60 = ssub.s32 %s59, 1
    %v62 = vld [vmem:[#allocation0] sm:%s60]
    %s63 = sshll.u32 1, 4
    %s64 = ssub.s32 %s63, 1
    %65 = vst [vmem:[%s1] sm:%s64] %v62
    %s66 = scalar_lea.vmem [#allocation0], 8
    %v67 = vld [vmem:[%s66] sm:%s60]
    %s68 = sshll.u32 1, 4
    %s69 = ssub.s32 %s68, 1
    %s70 = scalar_lea.vmem %s1, 4
    %71 = vst [vmem:[%s70] sm:%s69] %v67
    %s72 = scalar_lea.vmem [#allocation0], 16
    %v73 = vld [vmem:[%s72] sm:%s60]
    %s74 = sshll.u32 1, 4
    %s75 = ssub.s32 %s74, 1
    %s76 = smul.addr 4, 2
    %s77 = scalar_lea.vmem %s1, %s76
    %78 = vst [vmem:[%s77] sm:%s75] %v73

// kernel: spectral_norm_conv_forward.1
$region0: #{spectral_norm_conv_forward.1}
  #allocation0 [shape = 'u32[]', space=smem, size = 0x4, offset = 0x4, fixed_abs, tag = 'smem constant byte address 0x4 - core index']
  #allocation1 [shape = 'u32[144,128]{1,0:T(1,128)}', space=vmem, size = 0x12000, scoped, tag = 'internal scratch']
  #allocation2 [shape = 'f32[36,256]{1,0:T(8,128)}', space=vmem, size = 0xa000, scoped, tag = 'scratch operand']
  %s0 = inlined_call_operand.vmem [shape: f32[2,4,256], index: 0, kind: input, shape index: {}]
  %s1 = inlined_call_operand.vmem [shape: f32[8,36], index: 1, kind: input, shape index: {}]
  %s2 = inlined_call_operand.vmem [shape: f32[8,1], index: 2, kind: input, shape index: {}]
  %s3 = inlined_call_operand.vmem [shape: f32[8,1], index: 3, kind: input, shape index: {}]
  %s4 = inlined_call_operand.vmem [shape: f32[2,8,256], index: 4, kind: output, shape index: {0}]
  %s5 = inlined_call_operand.vmem [shape: f32[8,1], index: 5, kind: output, shape index: {1}]
  %s6 = inlined_call_operand.vmem [shape: f32[1,36], index: 6, kind: output, shape index: {2}]
  %7 = xla_tuple %s4, %s5, %s6
  %s8 = sld [smem:[#allocation0]]
  $region65: #{spectral_norm_conv_forward.1} parent=0
    _
  %s10 = ssub.s32 1, %s8
  %s11 = scalar_select 0, %s10, %s8
  loop: start=0, step=1, limit=4
  $region2: #{spectral_norm_conv_forward.1} parent=0 // loop_pre_header
    _
  $region3: #{spectral_norm_conv_forward.1} parent=0 // loop_header
    %s13 = sphi 0, %s17
    %p14 = scmp.ge.s32.totalorder %s13, 4
    %s23 = sphi 0, %s25
    %s26 = sphi 0, %s23
    %s27 = sphi 0, %s26
    %s43 = sphi 0, %s27
    %s47 = sphi 0, %s47
    %s49 = sphi 0, %s47
    %s50 = sphi 0, %s49
    %s64 = sphi 0, %s50
    %s68 = sphi 0, %s68
    %s70 = sphi 0, %s68
    %s71 = sphi 0, %s70
    %s85 = sphi 0, %s71
    %s89 = sphi 0, %s89
    %s91 = sphi 0, %s89
    %s92 = sphi 0, %s91
    %s106 = sphi 0, %s92
    %s112 = sphi 0, %s114
    %s115 = sphi 0, %s112
    %s116 = sphi 0, %s115
    %s132 = sphi 0, %s116
    %s136 = sphi 0, %s136
    %s138 = sphi 0, %s136
    %s139 = sphi 0, %s138
    %s153 = sphi 0, %s139
    %s157 = sphi 0, %s157
    %s159 = sphi 0, %s157
    %s160 = sphi 0, %s159
    %s174 = sphi 0, %s160
  $region4: #{spectral_norm_conv_forward.1} parent=0 // loop_header_branch
    %16 = sbr.rel (%p14) target = $region8
  $region5: #{spectral_norm_conv_forward.1} parent=0 // loop_body
    %s18 = ssub.s32 %s13, 1
    %s19 = ssub.s32 %s13, 2
    %s20 = sadd.s32 %s13, 1
    %s21 = ssub.s32 %s13, %s20
    %p22 = scmp.eq.s32.totalorder %s21, 0
    %s24 = sadd.s32 %s23, 1
    %s25 = scalar_select %p22, %s23, %s24
    %p28 = pneg %p22
    %p29 = scmp.eq.s32.totalorder %s13, 1
    %p30 = por %p28, %p29
    %p31 = scmp.ne.s32.totalorder %s23, %s26
    %p32 = scmp.eq.s32.totalorder %s13, 0
    %p33 = por %p31, %p32
    %p34 = scmp.ne.s32.totalorder %s23, %s26
    %p35 = scmp.eq.s32.totalorder %s18, 1
    %p36 = por %p34, %p35
    %p37 = scmp.ne.s32.totalorder %s26, %s27
    %p38 = scmp.eq.s32.totalorder %s18, 0
    %p39 = por %p37, %p38
    %p40 = scmp.ne.s32.totalorder %s26, %s27
    %p41 = scmp.eq.s32.totalorder %s19, 1
    %p42 = por %p40, %p41
    %p44 = scmp.ne.s32.totalorder %s27, %s43
    %p45 = scmp.eq.s32.totalorder %s19, 0
    %p46 = por %p44, %p45
    %s48 = sadd.s32 %s47, 1
    %p51 = scmp.eq.s32.totalorder %s13, 1
    %p52 = scmp.ne.s32.totalorder %s47, %s49
    %p53 = scmp.eq.s32.totalorder %s13, 0
    %p54 = por %p52, %p53
    %p55 = scmp.ne.s32.totalorder %s47, %s49
    %p56 = scmp.eq.s32.totalorder %s18, 1
    %p57 = por %p55, %p56
    %p58 = scmp.ne.s32.totalorder %s49, %s50
    %p59 = scmp.eq.s32.totalorder %s18, 0
    %p60 = por %p58, %p59
    %p61 = scmp.ne.s32.totalorder %s49, %s50
    %p62 = scmp.eq.s32.totalorder %s19, 1
    %p63 = por %p61, %p62
    %p65 = scmp.ne.s32.totalorder %s50, %s64
    %p66 = scmp.eq.s32.totalorder %s19, 0
    %p67 = por %p65, %p66
    %s69 = sadd.s32 %s68, 1
    %p72 = scmp.eq.s32.totalorder %s13, 1
    %p73 = scmp.ne.s32.totalorder %s68, %s70
    %p74 = scmp.eq.s32.totalorder %s13, 0
    %p75 = por %p73, %p74
    %p76 = scmp.ne.s32.totalorder %s68, %s70
    %p77 = scmp.eq.s32.totalorder %s18, 1
    %p78 = por %p76, %p77
    %p79 = scmp.ne.s32.totalorder %s70, %s71
    %p80 = scmp.eq.s32.totalorder %s18, 0
    %p81 = por %p79, %p80
    %p82 = scmp.ne.s32.totalorder %s70, %s71
    %p83 = scmp.eq.s32.totalorder %s19, 1
    %p84 = por %p82, %p83
    %p86 = scmp.ne.s32.totalorder %s71, %s85
    %p87 = scmp.eq.s32.totalorder %s19, 0
    %p88 = por %p86, %p87
    %s90 = sadd.s32 %s89, 1
    %p93 = scmp.eq.s32.totalorder %s13, 1
    %p94 = scmp.ne.s32.totalorder %s89, %s91
    %p95 = scmp.eq.s32.totalorder %s13, 0
    %p96 = por %p94, %p95
    %p97 = scmp.ne.s32.totalorder %s89, %s91
    %p98 = scmp.eq.s32.totalorder %s18, 1
    %p99 = por %p97, %p98
    %p100 = scmp.ne.s32.totalorder %s91, %s92
    %p101 = scmp.eq.s32.totalorder %s18, 0
    %p102 = por %p100, %p101
    %p103 = scmp.ne.s32.totalorder %s91, %s92
    %p104 = scmp.eq.s32.totalorder %s19, 1
    %p105 = por %p103, %p104
    %p107 = scmp.ne.s32.totalorder %s92, %s106
    %p108 = scmp.eq.s32.totalorder %s19, 0
    %p109 = por %p107, %p108
    %s110 = ssub.s32 %s13, %s20
    %p111 = scmp.eq.s32.totalorder %s110, 0
    %s113 = sadd.s32 %s112, 1
    %s114 = scalar_select %p111, %s112, %s113
    %p117 = pneg %p111
    %p118 = scmp.eq.s32.totalorder %s13, 1
    %p119 = por %p117, %p118
    %p120 = scmp.ne.s32.totalorder %s112, %s115
    %p121 = scmp.eq.s32.totalorder %s13, 0
    %p122 = por %p120, %p121
    %p123 = scmp.ne.s32.totalorder %s112, %s115
    %p124 = scmp.eq.s32.totalorder %s18, 1
    %p125 = por %p123, %p124
    %p126 = scmp.ne.s32.totalorder %s115, %s116
    %p127 = scmp.eq.s32.totalorder %s18, 0
    %p128 = por %p126, %p127
    %p129 = scmp.ne.s32.totalorder %s115, %s116
    %p130 = scmp.eq.s32.totalorder %s19, 1
    %p131 = por %p129, %p130
    %p133 = scmp.ne.s32.totalorder %s116, %s132
    %p134 = scmp.eq.s32.totalorder %s19, 0
    %p135 = por %p133, %p134
    %s137 = sadd.s32 %s136, 1
    %p140 = scmp.eq.s32.totalorder %s13, 1
    %p141 = scmp.ne.s32.totalorder %s136, %s138
    %p142 = scmp.eq.s32.totalorder %s13, 0
    %p143 = por %p141, %p142
    %p144 = scmp.ne.s32.totalorder %s136, %s138
    %p145 = scmp.eq.s32.totalorder %s18, 1
    %p146 = por %p144, %p145
    %p147 = scmp.ne.s32.totalorder %s138, %s139
    %p148 = scmp.eq.s32.totalorder %s18, 0
    %p149 = por %p147, %p148
    %p150 = scmp.ne.s32.totalorder %s138, %s139
    %p151 = scmp.eq.s32.totalorder %s19, 1
    %p152 = por %p150, %p151
    %p154 = scmp.ne.s32.totalorder %s139, %s153
    %p155 = scmp.eq.s32.totalorder %s19, 0
    %p156 = por %p154, %p155
    %s158 = sadd.s32 %s157, 1
    %p161 = scmp.eq.s32.totalorder %s13, 1
    %p162 = scmp.ne.s32.totalorder %s157, %s159
    %p163 = scmp.eq.s32.totalorder %s13, 0
    %p164 = por %p162, %p163
    %p165 = scmp.ne.s32.totalorder %s157, %s159
    %p166 = scmp.eq.s32.totalorder %s18, 1
    %p167 = por %p165, %p166
    %p168 = scmp.ne.s32.totalorder %s159, %s160
    %p169 = scmp.eq.s32.totalorder %s18, 0
    %p170 = por %p168, %p169
    %p171 = scmp.ne.s32.totalorder %s159, %s160
    %p172 = scmp.eq.s32.totalorder %s19, 1
    %p173 = por %p171, %p172
    %p175 = scmp.ne.s32.totalorder %s160, %s174
    %p176 = scmp.eq.s32.totalorder %s19, 0
    %p177 = por %p175, %p176
    %p178 = scmp.le.s32.totalorder 1, %s13
    %p179 = scmp.lt.s32.totalorder %s13, 3
    %p180 = pnand %p178, %p179
    %p181 = pneg %p180
    // Predicated region
    $region9: #{spectral_norm_conv_forward.1} parent=5 // pred_check
      _
    $region10: #{spectral_norm_conv_forward.1} parent=5 // pred_check_branch
      %183 = sbr.rel (%p180) target = $region12
    $region11: #{spectral_norm_conv_forward.1} parent=5 // pred_region
      %s184 = ssub.s32 %s13, 1
      // Predicated region
      $region13: #{spectral_norm_conv_forward.1} parent=11 // pred_check
        %p185 = pneg %p60
      $region14: #{spectral_norm_conv_forward.1} parent=11 // pred_check_branch
        %187 = sbr.rel (%p185) target = $region16
      $region15: #{spectral_norm_conv_forward.1} parent=11 // pred_region
        _
      $region16: #{spectral_norm_conv_forward.1} parent=11 // pred_fallthru
        _
      // Predicated region
      $region17: #{spectral_norm_conv_forward.1} parent=11 // pred_check
        %p188 = pneg %p81
      $region18: #{spectral_norm_conv_forward.1} parent=11 // pred_check_branch
        %190 = sbr.rel (%p188) target = $region20
      $region19: #{spectral_norm_conv_forward.1} parent=11 // pred_region
        _
      $region20: #{spectral_norm_conv_forward.1} parent=11 // pred_fallthru
        _
      // Predicated region
      $region21: #{spectral_norm_conv_forward.1} parent=11 // pred_check
        %p191 = pneg %p102
      $region22: #{spectral_norm_conv_forward.1} parent=11 // pred_check_branch
        %193 = sbr.rel (%p191) target = $region24
      $region23: #{spectral_norm_conv_forward.1} parent=11 // pred_region
        _
      $region24: #{spectral_norm_conv_forward.1} parent=11 // pred_fallthru
        _
    $region12: #{spectral_norm_conv_forward.1} parent=5 // pred_fallthru
      _
    %p194 = scmp.lt.s32.totalorder %s13, 2
    // Predicated region
    $region25: #{spectral_norm_conv_forward.1} parent=5 // pred_check
      %p195 = pneg %p194
    $region26: #{spectral_norm_conv_forward.1} parent=5 // pred_check_branch
      %197 = sbr.rel (%p195) target = $region28
    $region27: #{spectral_norm_conv_forward.1} parent=5 // pred_region
      // Predicated region
      $region29: #{spectral_norm_conv_forward.1} parent=27 // pred_check
        %p198 = pneg %p33
      $region30: #{spectral_norm_conv_forward.1} parent=27 // pred_check_branch
        %200 = sbr.rel (%p198) target = $region32
      $region31: #{spectral_norm_conv_forward.1} parent=27 // pred_region
        %p201 = scmp.lt.s32.totalorder %s13, 1
        %s202 = scalar_select %p201, %s13, 1
        %s203 = smul.addr %s202, 2
        %s204 = smul.addr %s203, 4
        %s205 = scalar_lea.vmem %s0, %s204
      $region32: #{spectral_norm_conv_forward.1} parent=27 // pred_fallthru
        _
    $region28: #{spectral_norm_conv_forward.1} parent=5 // pred_fallthru
      _
    %p206 = scmp.le.s32.totalorder 1, %s13
    %p207 = scmp.lt.s32.totalorder %s13, 3
    %p208 = pnand %p206, %p207
    %p209 = pneg %p208
    // Predicated region
    $region33: #{spectral_norm_conv_forward.1} parent=5 // pred_check
      _
    $region34: #{spectral_norm_conv_forward.1} parent=5 // pred_check_branch
      %211 = sbr.rel (%p208) target = $region36
    $region35: #{spectral_norm_conv_forward.1} parent=5 // pred_region
      %s212 = ssub.s32 %s13, 1
      %p213 = scmp.lt.s32.totalorder %s18, 1
      %s214 = scalar_select %p213, %s18, 1
      %s215 = smul.addr %s214, 2
      %s216 = smul.addr %s215, 4
      %s217 = scalar_lea.vmem %s0, %s216
      %p218 = pneg %p39
      %p219 = pneg %p36
      %p220 = pneg %p60
      %p221 = pneg %p57
      %p222 = pneg %p81
      %p223 = pneg %p78
      %p224 = pneg %p102
      %p225 = pneg %p99
      %p226 = pneg %p128
      %p227 = pneg %p125
      %p228 = scmp.lt.s32.totalorder %s18, 1
      %s229 = scalar_select %p228, %s18, 1
      %s230 = smul.addr %s229, 2
      %s231 = smul.addr %s230, 8
      %s232 = scalar_lea.vmem %s4, %s231
      %p233 = pneg %p149
      %p234 = pneg %p146
      %p235 = pneg %p170
      %p236 = pneg %p167
      %p237 = scmp.lt.s32.totalorder %s18, 1
      %s238 = scalar_select %p237, %s18, 1
      %s239 = smul.addr %s238, 2
      %s240 = smul.addr %s239, 4
      %s241 = scalar_lea.vmem %s0, %s240
      %p242 = scmp.lt.s32.totalorder %s18, 1
      %s243 = scalar_select %p242, %s18, 1
      %s244 = smul.addr %s243, 2
      %s245 = smul.addr %s244, 8
      %s246 = scalar_lea.vmem %s4, %s245
      %v247 = vld [vmem:[%s1] sm:$0xff]
      %v248 = vld [vmem:[%s2] sm:$0xff]
      %250 = vset.pattern.permute.xlu0 0
      %251 = vperm.xlu0 %250, %v248
      %v252 = vpop.permute.xlu0 %251
      %v254 = vmul.f32 %v247, %v252
      %vm255 = vcmask 293888
      %v256 = vsel %vm255, %v254, 0.0
      %v257 = vrot.slane %v256, 4
      %v258 = vadd.f32 %v256, %v257
      %v259 = vrot.slane %v258, 2
      %v260 = vadd.f32 %v258, %v259
      %v261 = vrot.slane %v260, 1
      %v262 = vadd.f32 %v260, %v261
      %v263 = vmul.f32 %v262, %v262
      %vm264 = vcmask 286720
      %v265 = vsel %vm264, %v263, 0.0
      %266 = vadd.xlane.f32.xlu0 %v265
      %v267 = vpop.xlane.xlu0 %266
      %v268 = vrot.slane %v267, 4
      %v269 = vadd.f32 %v267, %v268
      %v270 = vrot.slane %v269, 2
      %v271 = vadd.f32 %v269, %v270
      %v272 = vrot.slane %v271, 1
      %v273 = vadd.f32 %v271, %v272
      %s274 = vtos %v273
      %v275 = vstv %s274
      %v276 = vrsqrt.pop %v275
      %v277 = vmul.f32 %v275, %v276
      %vm278 = vcmp.eq.f32.partialorder %v275, inf
      %v279 = vsel %vm278, %v275, %v277
      %vm280 = vcmp.eq.f32.partialorder %v275, 0.0
      %v281 = vand.u32 %v275, 2147483648
      %v282 = vsel %vm280, %v281, %v279
      %v283 = vadd.f32 %v282, 1e-12
      %v284 = vrcp.pop %v283
      %v285 = vmul.f32 1.0, %v284
      %v286 = vmul.f32 %v262, %v285
      %v287 = vmul.f32 %v247, %v286
      %v288 = vsel %vm255, %v287, 0.0
      %289 = vadd.xlane.f32.xlu0 %v288
      %v290 = vpop.xlane.xlu0 %289
      %v291 = vmul.f32 %v290, %v290
      %vm292 = vcmask 7168
      %v293 = vsel %vm292, %v291, 0.0
      %294 = vadd.xlane.f32.xlu0 %v293
      %v295 = vpop.xlane.xlu0 %294
      %v296 = vrot.slane %v295, 4
      %v297 = vadd.f32 %v295, %v296
      %v298 = vrot.slane %v297, 2
      %v299 = vadd.f32 %v297, %v298
      %v300 = vrot.slane %v299, 1
      %v301 = vadd.f32 %v299, %v300
      %s302 = vtos %v301
      %v303 = vstv %s302
      %v304 = vrsqrt.pop %v303
      %v305 = vmul.f32 %v303, %v304
      %vm306 = vcmp.eq.f32.partialorder %v303, inf
      %v307 = vsel %vm306, %v303, %v305
      %vm308 = vcmp.eq.f32.partialorder %v303, 0.0
      %v309 = vand.u32 %v303, 2147483648
      %v310 = vsel %vm308, %v309, %v307
      %v311 = vadd.f32 %v310, 1e-12
      %v312 = vrcp.pop %v311
      %v313 = vmul.f32 1.0, %v312
      %v314 = vmul.f32 %v290, %v313
      %v315 = vmul.f32 %v314, %v290
      %v316 = vsel %vm292, %v315, 0.0
      %317 = vadd.xlane.f32.xlu0 %v316
      %v318 = vpop.xlane.xlu0 %317
      %v319 = vrot.slane %v318, 4
      %v320 = vadd.f32 %v318, %v319
      %v321 = vrot.slane %v320, 2
      %v322 = vadd.f32 %v320, %v321
      %v323 = vrot.slane %v322, 1
      %v324 = vadd.f32 %v322, %v323
      %s325 = vtos %v324
      %v326 = vstv %s325
      %v327 = vrcp.pop %v326
      %v328 = vmul.f32 1.0, %v327
      %329 = vst.msk [vmem:[%s5] sm:$0xff] %vm292, %v314
      %330 = vst.msk [vmem:[%s6] sm:$0x1] %vm264, %v286
      %v331 = vlaneseq
      %v332 = vand.u32 %v331, 127
      %v333 = vadd.s32 %v332, 128
      %v334 = vand.u32 %v332, 15
      %v335 = vand.u32 %v333, 15
      %v336 = vshra.s32 %v332, 4
      %v337 = vshra.s32 %v333, 4
      %vm338 = vcmp.ge.s32.totalorder %v334, 1
      %vm339 = vcmp.ge.s32.totalorder %v335, 1
      %v340 = vsel %vm338, 1, 0
      %v341 = vsel %vm339, 1, 0
      %v342 = vcvt.s32.f32 %v340
      %v343 = vcvt.s32.f32 %v341
      %vm344 = vcmp.lt.s32.totalorder %v334, 15
      %vm345 = vcmp.lt.s32.totalorder %v335, 15
      %v346 = vsel %vm344, 1, 0
      %v347 = vsel %vm345, 1, 0
      %v348 = vcvt.s32.f32 %v346
      %v349 = vcvt.s32.f32 %v347
      %vm350 = vcmp.ge.s32.totalorder %v336, 1
      %vm351 = vcmp.ge.s32.totalorder %v337, 1
      %v352 = vsel %vm350, 1, 0
      %v353 = vsel %vm351, 1, 0
      %v354 = vcvt.s32.f32 %v352
      %v355 = vcvt.s32.f32 %v353
      %vm356 = vcmp.lt.s32.totalorder %v336, 15
      %vm357 = vcmp.lt.s32.totalorder %v337, 15
      %v358 = vsel %vm356, 1, 0
      %v359 = vsel %vm357, 1, 0
      %v360 = vcvt.s32.f32 %v358
      %v361 = vcvt.s32.f32 %v359
      %v362 = vmul.f32 %v354, %v342
      %v363 = vmul.f32 %v355, %v343
      %v364 = vmul.f32 %v354, %v348
      %v365 = vmul.f32 %v355, %v349
      %v366 = vmul.f32 %v360, %v342
      %v367 = vmul.f32 %v361, %v343
      %v368 = vmul.f32 %v360, %v348
      %v369 = vmul.f32 %v361, %v349
      %v370 = vld [vmem:[%s241] sm:$0xff]
      %v372 = vcombine.high %v370, %v370
      %374 = vrot.lane.b32.xlu0 %v370, 17
      %v375 = vpop.permute.xlu0 %374
      %376 = vrot.lane.b32.xlu0 %v372, 17
      %v377 = vpop.permute.xlu0 %376
      %vm378 = vcmp.lt.s32.totalorder %v332, 17
      %v379 = vsel %vm378, %v375, %v377
      %v380 = vsel %vm378, %v377, %v375
      %v381 = vmul.f32 %v380, %v362
      %v382 = vmul.f32 %v379, %v363
      %383 = vst [vmem:[#allocation2] sm:$0xf] %v381
      %384 = vst [vmem:[#allocation2 + $0x8] sm:$0xf] %v382
      %385 = vrot.lane.b32.xlu0 %v370, 16
      %v386 = vpop.permute.xlu0 %385
      %387 = vrot.lane.b32.xlu0 %v372, 16
      %v388 = vpop.permute.xlu0 %387
      %vm389 = vcmp.lt.s32.totalorder %v332, 16
      %v390 = vsel %vm389, %v386, %v388
      %v391 = vsel %vm389, %v388, %v386
      %v392 = vmul.f32 %v391, %v354
      %v393 = vmul.f32 %v390, %v355
      %v396 = vrot.slane %v392, 4
      %v397 = vrot.slane %v393, 4
      %400 = vst [vmem:[#allocation2] sm:$0xf0] %v396
      %401 = vst [vmem:[#allocation2 + $0x8] sm:$0xf0] %v397
      %402 = vrot.lane.b32.xlu0 %v370, 15
      %v403 = vpop.permute.xlu0 %402
      %404 = vrot.lane.b32.xlu0 %v372, 15
      %v405 = vpop.permute.xlu0 %404
      %vm406 = vcmp.lt.s32.totalorder %v332, 15
      %v407 = vsel %vm406, %v403, %v405
      %v408 = vsel %vm406, %v405, %v403
      %v409 = vmul.f32 %v408, %v364
      %v410 = vmul.f32 %v407, %v365
      %411 = vst [vmem:[#allocation2 + $0x10] sm:$0xf] %v409
      %412 = vst [vmem:[#allocation2 + $0x18] sm:$0xf] %v410
      %413 = vrot.lane.b32.xlu0 %v370, 1
      %v414 = vpop.permute.xlu0 %413
      %415 = vrot.lane.b32.xlu0 %v372, 1
      %v416 = vpop.permute.xlu0 %415
      %vm417 = vcmp.lt.s32.totalorder %v332, 1
      %v418 = vsel %vm417, %v414, %v416
      %v419 = vsel %vm417, %v416, %v414
      %v420 = vmul.f32 %v419, %v342
      %v421 = vmul.f32 %v418, %v343
      %v424 = vrot.slane %v420, 4
      %v425 = vrot.slane %v421, 4
      %428 = vst [vmem:[#allocation2 + $0x10] sm:$0xf0] %v424
      %429 = vst [vmem:[#allocation2 + $0x18] sm:$0xf0] %v425
      %430 = vst [vmem:[#allocation2 + $0x20] sm:$0xf] %v370
      %431 = vst [vmem:[#allocation2 + $0x28] sm:$0xf] %v372
      %432 = vrot.lane.b32.xlu0 %v370, 127
      %v433 = vpop.permute.xlu0 %432
      %434 = vrot.lane.b32.xlu0 %v372, 127
      %v435 = vpop.permute.xlu0 %434
      %vm436 = vcmp.lt.s32.totalorder %v332, 127
      %v437 = vsel %vm436, %v433, %v435
      %v438 = vsel %vm436, %v435, %v433
      %v439 = vmul.f32 %v437, %v348
      %v440 = vmul.f32 %v438, %v349
      %v443 = vrot.slane %v439, 4
      %v444 = vrot.slane %v440, 4
      %447 = vst [vmem:[#allocation2 + $0x20] sm:$0xf0] %v443
      %448 = vst [vmem:[#allocation2 + $0x28] sm:$0xf0] %v444
      %449 = vrot.lane.b32.xlu0 %v370, 113
      %v450 = vpop.permute.xlu0 %449
      %451 = vrot.lane.b32.xlu0 %v372, 113
      %v452 = vpop.permute.xlu0 %451
      %vm453 = vcmp.lt.s32.totalorder %v332, 113
      %v454 = vsel %vm453, %v450, %v452
      %v455 = vsel %vm453, %v452, %v450
      %v456 = vmul.f32 %v454, %v366
      %v457 = vmul.f32 %v455, %v367
      %458 = vst [vmem:[#allocation2 + $0x30] sm:$0xf] %v456
      %459 = vst [vmem:[#allocation2 + $0x38] sm:$0xf] %v457
      %460 = vrot.lane.b32.xlu0 %v370, 112
      %v461 = vpop.permute.xlu0 %460
      %462 = vrot.lane.b32.xlu0 %v372, 112
      %v463 = vpop.permute.xlu0 %462
      %vm464 = vcmp.lt.s32.totalorder %v332, 112
      %v465 = vsel %vm464, %v461, %v463
      %v466 = vsel %vm464, %v463, %v461
      %v467 = vmul.f32 %v465, %v360
      %v468 = vmul.f32 %v466, %v361
      %v471 = vrot.slane %v467, 4
      %v472 = vrot.slane %v468, 4
      %475 = vst [vmem:[#allocation2 + $0x30] sm:$0xf0] %v471
      %476 = vst [vmem:[#allocation2 + $0x38] sm:$0xf0] %v472
      %477 = vrot.lane.b32.xlu0 %v370, 111
      %v478 = vpop.permute.xlu0 %477
      %479 = vrot.lane.b32.xlu0 %v372, 111
      %v480 = vpop.permute.xlu0 %479
      %vm481 = vcmp.lt.s32.totalorder %v332, 111
      %v482 = vsel %vm481, %v478, %v480
      %v483 = vsel %vm481, %v480, %v478
      %v484 = vmul.f32 %v482, %v368
      %v485 = vmul.f32 %v483, %v369
      %486 = vst [vmem:[#allocation2 + $0x40] sm:$0xf] %v484
      %487 = vst [vmem:[#allocation2 + $0x48] sm:$0xf] %v485
      %v488 = vld [vmem:[#allocation2] sm:$0xff]
      %v489 = vld [vmem:[#allocation2 + $0x8] sm:$0xff]
      %v490 = vld [vmem:[#allocation2 + $0x10] sm:$0xff]
      %v491 = vld [vmem:[#allocation2 + $0x18] sm:$0xff]
      %v492 = vld [vmem:[#allocation2 + $0x20] sm:$0xff]
      %v493 = vld [vmem:[#allocation2 + $0x28] sm:$0xff]
      %v494 = vld [vmem:[#allocation2 + $0x30] sm:$0xff]
      %v495 = vld [vmem:[#allocation2 + $0x38] sm:$0xff]
      %v496 = vld [vmem:[#allocation2 + $0x40] sm:$0xf]
      %v497 = vld [vmem:[#allocation2 + $0x48] sm:$0xf]
      %v499 = vsel %vm255, %v247, 0
      %vm501 = vcmask 1043456
      %v503 = vsel %vm501, %v496, 0
      %v506 = vsel %vm501, %v497, 0
      %508 = vmatprep.subr.mxu0 0.0
      %509 = vmatpush1.msra.mxu0 0.0
      %510 = vmatprep.subr.mxu0 0.0
      %511 = vmatpush1.msra.mxu0 0.0
      %512 = vmatprep.subr.mxu0 0.0
      %513 = vmatpush1.msra.mxu0 0.0
      %514 = vmatprep.subr.mxu0 0.0
      %515 = vmatpush1.msra.mxu0 0.0
      %516 = vmatprep.subr.mxu0 0.0
      %517 = vmatpush1.msra.mxu0 0.0
      %518 = vmatprep.subr.mxu0 0.0
      %519 = vmatpush1.msra.mxu0 0.0
      %520 = vmatprep.subr.mxu0 0.0
      %521 = vmatpush1.msra.mxu0 0.0
      %522 = vmatprep.subr.mxu0 0.0
      %523 = vmatpush1.msra.mxu0 0.0
      %524 = vmatprep.subr.mxu0 0.0
      %525 = vmatpush1.msra.mxu0 0.0
      %526 = vmatprep.subr.mxu0 0.0
      %527 = vmatpush1.msra.mxu0 0.0
      %528 = vmatprep.subr.mxu0 0.0
      %529 = vmatpush1.msra.mxu0 0.0
      %v530 = vand.u32 %v506, 4294901760
      %531 = vmatprep.subr.mxu0 %v530
      %v532 = vand.u32 %v503, 4294901760
      %533 = vmatpush1.msra.mxu0 %v532
      %v534 = vand.u32 %v495, 4294901760
      %535 = vmatprep.subr.mxu0 %v534
      %v536 = vand.u32 %v494, 4294901760
      %537 = vmatpush1.msra.mxu0 %v536
      %v538 = vand.u32 %v493, 4294901760
      %539 = vmatprep.subr.mxu0 %v538
      %v540 = vand.u32 %v492, 4294901760
      %541 = vmatpush1.msra.mxu0 %v540
      %v542 = vand.u32 %v491, 4294901760
      %543 = vmatprep.subr.mxu0 %v542
      %v544 = vand.u32 %v490, 4294901760
      %545 = vmatpush1.msra.mxu0 %v544
      %v546 = vand.u32 %v489, 4294901760
      %547 = vmatprep.subr.mxu0 %v546
      %v548 = vand.u32 %v488, 4294901760
      %549 = vmatpush1.msra.mxu0 %v548
      %550 = vmatprep.subr.mxu0 0.0
      %551 = vmatpush2.msra.mxu0 0.0
      %552 = vmatprep.subr.mxu0 0.0
      %553 = vmatpush2.msra.mxu0 0.0
      %554 = vmatprep.subr.mxu0 0.0
      %555 = vmatpush2.msra.mxu0 0.0
      %556 = vmatprep.subr.mxu0 0.0
      %557 = vmatpush2.msra.mxu0 0.0
      %558 = vmatprep.subr.mxu0 0.0
      %559 = vmatpush2.msra.mxu0 0.0
      %560 = vmatprep.subr.mxu0 0.0
      %561 = vmatpush2.msra.mxu0 0.0
      %562 = vmatprep.subr.mxu0 0.0
      %563 = vmatpush2.msra.mxu0 0.0
      %564 = vmatprep.subr.mxu0 0.0
      %565 = vmatpush2.msra.mxu0 0.0
      %566 = vmatprep.subr.mxu0 0.0
      %567 = vmatpush2.msra.mxu0 0.0
      %568 = vmatprep.subr.mxu0 0.0
      %569 = vmatpush2.msra.mxu0 0.0
      %570 = vmatprep.subr.mxu0 0.0
      %571 = vmatpush2.msra.mxu0 0.0
      %572 = vmatprep.subr.mxu0 0.0
      %573 = vmatpush2.msra.mxu0 0.0
      %574 = vmatprep.subr.mxu0 0.0
      %575 = vmatpush2.msra.mxu0 0.0
      %576 = vmatprep.subr.mxu0 0.0
      %577 = vmatpush2.msra.mxu0 0.0
      %578 = vmatprep.subr.mxu0 0.0
      %579 = vmatpush2.msra.mxu0 0.0
      %580 = vmatprep.subr.mxu0 0.0
      %581 = vmatpush2.msra.mxu0 0.0
      %582 = vmatprep.mubr.f32.mxu0 0.0
      %v583 = vand.u32 %v499, 4294901760
      %v584 = vsub.f32 %v499, %v583
      %v585 = vand.u32 %v584, 4294901760
      %v586 = vsub.f32 %v584, %v585
      %v587 = vand.u32 %v586, 4294901760
      %588 = vmatmul.mubr.f32.gmra.mxu0 %v587
      %v589 = vpop.f32.mrf.mxu0
      %v590 = vadd.f32 0.0, %v589
      %v591 = vpop.f32.mrf.mxu0
      %v592 = vadd.f32 0.0, %v591
      %593 = vdwg.mxu0
      %594 = vmatprep.subr.mxu0 0.0
      %595 = vmatpush1.msra.mxu0 0.0
      %596 = vmatprep.subr.mxu0 0.0
      %597 = vmatpush1.msra.mxu0 0.0
      %598 = vmatprep.subr.mxu0 0.0
      %599 = vmatpush1.msra.mxu0 0.0
      %600 = vmatprep.subr.mxu0 0.0
      %601 = vmatpush1.msra.mxu0 0.0
      %602 = vmatprep.subr.mxu0 0.0
      %603 = vmatpush1.msra.mxu0 0.0
      %604 = vmatprep.subr.mxu0 0.0
      %605 = vmatpush1.msra.mxu0 0.0
      %606 = vmatprep.subr.mxu0 0.0
      %607 = vmatpush1.msra.mxu0 0.0
      %608 = vmatprep.subr.mxu0 0.0
      %609 = vmatpush1.msra.mxu0 0.0
      %610 = vmatprep.subr.mxu0 0.0
      %611 = vmatpush1.msra.mxu0 0.0
      %612 = vmatprep.subr.mxu0 0.0
      %613 = vmatpush1.msra.mxu0 0.0
      %614 = vmatprep.subr.mxu0 0.0
      %615 = vmatpush1.msra.mxu0 0.0
      %v616 = vand.u32 %v506, 4294901760
      %v617 = vsub.f32 %v506, %v616
      %v618 = vand.u32 %v617, 4294901760
      %v619 = vsub.f32 %v617, %v618
      %v620 = vand.u32 %v619, 4294901760
      %621 = vmatprep.subr.mxu0 %v620
      %v622 = vand.u32 %v503, 4294901760
      %v623 = vsub.f32 %v503, %v622
      %v624 = vand.u32 %v623, 4294901760
      %v625 = vsub.f32 %v623, %v624
      %v626 = vand.u32 %v625, 4294901760
      %627 = vmatpush1.msra.mxu0 %v626
      %v628 = vand.u32 %v495, 4294901760
      %v629 = vsub.f32 %v495, %v628
      %v630 = vand.u32 %v629, 4294901760
      %v631 = vsub.f32 %v629, %v630
      %v632 = vand.u32 %v631, 4294901760
      %633 = vmatprep.subr.mxu0 %v632
      %v634 = vand.u32 %v494, 4294901760
      %v635 = vsub.f32 %v494, %v634
      %v636 = vand.u32 %v635, 4294901760
      %v637 = vsub.f32 %v635, %v636
      %v638 = vand.u32 %v637, 4294901760
      %639 = vmatpush1.msra.mxu0 %v638
      %v640 = vand.u32 %v493, 4294901760
      %v641 = vsub.f32 %v493, %v640
      %v642 = vand.u32 %v641, 4294901760
      %v643 = vsub.f32 %v641, %v642
      %v644 = vand.u32 %v643, 4294901760
      %645 = vmatprep.subr.mxu0 %v644
      %v646 = vand.u32 %v492, 4294901760
      %v647 = vsub.f32 %v492, %v646
      %v648 = vand.u32 %v647, 4294901760
      %v649 = vsub.f32 %v647, %v648
      %v650 = vand.u32 %v649, 4294901760
      %651 = vmatpush1.msra.mxu0 %v650
      %v652 = vand.u32 %v491, 4294901760
      %v653 = vsub.f32 %v491, %v652
      %v654 = vand.u32 %v653, 4294901760
      %v655 = vsub.f32 %v653, %v654
      %v656 = vand.u32 %v655, 4294901760
      %657 = vmatprep.subr.mxu0 %v656
      %v658 = vand.u32 %v490, 4294901760
      %v659 = vsub.f32 %v490, %v658
      %v660 = vand.u32 %v659, 4294901760
      %v661 = vsub.f32 %v659, %v660
      %v662 = vand.u32 %v661, 4294901760
      %663 = vmatpush1.msra.mxu0 %v662
      %v664 = vand.u32 %v489, 4294901760
      %v665 = vsub.f32 %v489, %v664
      %v666 = vand.u32 %v665, 4294901760
      %v667 = vsub.f32 %v665, %v666
      %v668 = vand.u32 %v667, 4294901760
      %669 = vmatprep.subr.mxu0 %v668
      %v670 = vand.u32 %v488, 4294901760
      %v671 = vsub.f32 %v488, %v670
      %v672 = vand.u32 %v671, 4294901760
      %v673 = vsub.f32 %v671, %v672
      %v674 = vand.u32 %v673, 4294901760
      %675 = vmatpush1.msra.mxu0 %v674
      %676 = vmatprep.subr.mxu0 0.0
      %677 = vmatpush2.msra.mxu0 0.0
      %678 = vmatprep.subr.mxu0 0.0
      %679 = vmatpush2.msra.mxu0 0.0
      %680 = vmatprep.subr.mxu0 0.0
      %681 = vmatpush2.msra.mxu0 0.0
      %682 = vmatprep.subr.mxu0 0.0
      %683 = vmatpush2.msra.mxu0 0.0
      %684 = vmatprep.subr.mxu0 0.0
      %685 = vmatpush2.msra.mxu0 0.0
      %686 = vmatprep.subr.mxu0 0.0
      %687 = vmatpush2.msra.mxu0 0.0
      %688 = vmatprep.subr.mxu0 0.0
      %689 = vmatpush2.msra.mxu0 0.0
      %690 = vmatprep.subr.mxu0 0.0
      %691 = vmatpush2.msra.mxu0 0.0
      %692 = vmatprep.subr.mxu0 0.0
      %693 = vmatpush2.msra.mxu0 0.0
      %694 = vmatprep.subr.mxu0 0.0
      %695 = vmatpush2.msra.mxu0 0.0
      %696 = vmatprep.subr.mxu0 0.0
      %697 = vmatpush2.msra.mxu0 0.0
      %698 = vmatprep.subr.mxu0 0.0
      %699 = vmatpush2.msra.mxu0 0.0
      %700 = vmatprep.subr.mxu0 0.0
      %701 = vmatpush2.msra.mxu0 0.0
      %702 = vmatprep.subr.mxu0 0.0
      %703 = vmatpush2.msra.mxu0 0.0
      %704 = vmatprep.subr.mxu0 0.0
      %705 = vmatpush2.msra.mxu0 0.0
      %706 = vmatprep.subr.mxu0 0.0
      %707 = vmatpush2.msra.mxu0 0.0
      %708 = vmatprep.mubr.f32.mxu0 0.0
      %v709 = vand.u32 %v499, 4294901760
      %710 = vmatmul.mubr.f32.gmra.mxu0 %v709
      %v711 = vpop.f32.mrf.mxu0
      %v712 = vadd.f32 %v590, %v711
      %v713 = vpop.f32.mrf.mxu0
      %v714 = vadd.f32 %v592, %v713
      %715 = vdwg.mxu0
      %716 = vmatprep.subr.mxu0 0.0
      %717 = vmatpush1.msra.mxu0 0.0
      %718 = vmatprep.subr.mxu0 0.0
      %719 = vmatpush1.msra.mxu0 0.0
      %720 = vmatprep.subr.mxu0 0.0
      %721 = vmatpush1.msra.mxu0 0.0
      %722 = vmatprep.subr.mxu0 0.0
      %723 = vmatpush1.msra.mxu0 0.0
      %724 = vmatprep.subr.mxu0 0.0
      %725 = vmatpush1.msra.mxu0 0.0
      %726 = vmatprep.subr.mxu0 0.0
      %727 = vmatpush1.msra.mxu0 0.0
      %728 = vmatprep.subr.mxu0 0.0
      %729 = vmatpush1.msra.mxu0 0.0
      %730 = vmatprep.subr.mxu0 0.0
      %731 = vmatpush1.msra.mxu0 0.0
      %732 = vmatprep.subr.mxu0 0.0
      %733 = vmatpush1.msra.mxu0 0.0
      %734 = vmatprep.subr.mxu0 0.0
      %735 = vmatpush1.msra.mxu0 0.0
      %736 = vmatprep.subr.mxu0 0.0
      %737 = vmatpush1.msra.mxu0 0.0
      %v738 = vand.u32 %v506, 4294901760
      %v739 = vsub.f32 %v506, %v738
      %740 = vmatprep.subr.mxu0 %v739
      %v741 = vand.u32 %v503, 4294901760
      %v742 = vsub.f32 %v503, %v741
      %743 = vmatpush1.msra.mxu0 %v742
      %v744 = vand.u32 %v495, 4294901760
      %v745 = vsub.f32 %v495, %v744
      %746 = vmatprep.subr.mxu0 %v745
      %v747 = vand.u32 %v494, 4294901760
      %v748 = vsub.f32 %v494, %v747
      %749 = vmatpush1.msra.mxu0 %v748
      %v750 = vand.u32 %v493, 4294901760
      %v751 = vsub.f32 %v493, %v750
      %752 = vmatprep.subr.mxu0 %v751
      %v753 = vand.u32 %v492, 4294901760
      %v754 = vsub.f32 %v492, %v753
      %755 = vmatpush1.msra.mxu0 %v754
      %v756 = vand.u32 %v491, 4294901760
      %v757 = vsub.f32 %v491, %v756
      %758 = vmatprep.subr.mxu0 %v757
      %v759 = vand.u32 %v490, 4294901760
      %v760 = vsub.f32 %v490, %v759
      %761 = vmatpush1.msra.mxu0 %v760
      %v762 = vand.u32 %v489, 4294901760
      %v763 = vsub.f32 %v489, %v762
      %764 = vmatprep.subr.mxu0 %v763
      %v765 = vand.u32 %v488, 4294901760
      %v766 = vsub.f32 %v488, %v765
      %767 = vmatpush1.msra.mxu0 %v766
      %768 = vmatprep.subr.mxu0 0.0
      %769 = vmatpush2.msra.mxu0 0.0
      %770 = vmatprep.subr.mxu0 0.0
      %771 = vmatpush2.msra.mxu0 0.0
      %772 = vmatprep.subr.mxu0 0.0
      %773 = vmatpush2.msra.mxu0 0.0
      %774 = vmatprep.subr.mxu0 0.0
      %775 = vmatpush2.msra.mxu0 0.0
      %776 = vmatprep.subr.mxu0 0.0
      %777 = vmatpush2.msra.mxu0 0.0
      %778 = vmatprep.subr.mxu0 0.0
      %779 = vmatpush2.msra.mxu0 0.0
      %780 = vmatprep.subr.mxu0 0.0
      %781 = vmatpush2.msra.mxu0 0.0
      %782 = vmatprep.subr.mxu0 0.0
      %783 = vmatpush2.msra.mxu0 0.0
      %784 = vmatprep.subr.mxu0 0.0
      %785 = vmatpush2.msra.mxu0 0.0
      %786 = vmatprep.subr.mxu0 0.0
      %787 = vmatpush2.msra.mxu0 0.0
      %788 = vmatprep.subr.mxu0 0.0
      %789 = vmatpush2.msra.mxu0 0.0
      %790 = vmatprep.subr.mxu0 0.0
      %791 = vmatpush2.msra.mxu0 0.0
      %792 = vmatprep.subr.mxu0 0.0
      %793 = vmatpush2.msra.mxu0 0.0
      %794 = vmatprep.subr.mxu0 0.0
      %795 = vmatpush2.msra.mxu0 0.0
      %796 = vmatprep.subr.mxu0 0.0
      %797 = vmatpush2.msra.mxu0 0.0
      %798 = vmatprep.subr.mxu0 0.0
      %799 = vmatpush2.msra.mxu0 0.0
      %800 = vmatprep.mubr.f32.mxu0 0.0
      %v801 = vand.u32 %v499, 4294901760
      %v802 = vsub.f32 %v499, %v801
      %803 = vmatmul.mubr.f32.gmra.mxu0 %v802
      %v804 = vpop.f32.mrf.mxu0
      %v805 = vadd.f32 %v712, %v804
      %v806 = vpop.f32.mrf.mxu0
      %v807 = vadd.f32 %v714, %v806
      %808 = vdwg.mxu0
      %809 = vmatprep.subr.mxu0 0.0
      %810 = vmatpush1.msra.mxu0 0.0
      %811 = vmatprep.subr.mxu0 0.0
      %812 = vmatpush1.msra.mxu0 0.0
      %813 = vmatprep.subr.mxu0 0.0
      %814 = vmatpush1.msra.mxu0 0.0
      %815 = vmatprep.subr.mxu0 0.0
      %816 = vmatpush1.msra.mxu0 0.0
      %817 = vmatprep.subr.mxu0 0.0
      %818 = vmatpush1.msra.mxu0 0.0
      %819 = vmatprep.subr.mxu0 0.0
      %820 = vmatpush1.msra.mxu0 0.0
      %821 = vmatprep.subr.mxu0 0.0
      %822 = vmatpush1.msra.mxu0 0.0
      %823 = vmatprep.subr.mxu0 0.0
      %824 = vmatpush1.msra.mxu0 0.0
      %825 = vmatprep.subr.mxu0 0.0
      %826 = vmatpush1.msra.mxu0 0.0
      %827 = vmatprep.subr.mxu0 0.0
      %828 = vmatpush1.msra.mxu0 0.0
      %829 = vmatprep.subr.mxu0 0.0
      %830 = vmatpush1.msra.mxu0 0.0
      %v831 = vand.u32 %v506, 4294901760
      %832 = vmatprep.subr.mxu0 %v831
      %v833 = vand.u32 %v503, 4294901760
      %834 = vmatpush1.msra.mxu0 %v833
      %v835 = vand.u32 %v495, 4294901760
      %836 = vmatprep.subr.mxu0 %v835
      %v837 = vand.u32 %v494, 4294901760
      %838 = vmatpush1.msra.mxu0 %v837
      %v839 = vand.u32 %v493, 4294901760
      %840 = vmatprep.subr.mxu0 %v839
      %v841 = vand.u32 %v492, 4294901760
      %842 = vmatpush1.msra.mxu0 %v841
      %v843 = vand.u32 %v491, 4294901760
      %844 = vmatprep.subr.mxu0 %v843
      %v845 = vand.u32 %v490, 4294901760
      %846 = vmatpush1.msra.mxu0 %v845
      %v847 = vand.u32 %v489, 4294901760
      %848 = vmatprep.subr.mxu0 %v847
      %v849 = vand.u32 %v488, 4294901760
      %850 = vmatpush1.msra.mxu0 %v849
      %851 = vmatprep.subr.mxu0 0.0
      %852 = vmatpush2.msra.mxu0 0.0
      %853 = vmatprep.subr.mxu0 0.0
      %854 = vmatpush2.msra.mxu0 0.0
      %855 = vmatprep.subr.mxu0 0.0
      %856 = vmatpush2.msra.mxu0 0.0
      %857 = vmatprep.subr.mxu0 0.0
      %858 = vmatpush2.msra.mxu0 0.0
      %859 = vmatprep.subr.mxu0 0.0
      %860 = vmatpush2.msra.mxu0 0.0
      %861 = vmatprep.subr.mxu0 0.0
      %862 = vmatpush2.msra.mxu0 0.0
      %863 = vmatprep.subr.mxu0 0.0
      %864 = vmatpush2.msra.mxu0 0.0
      %865 = vmatprep.subr.mxu0 0.0
      %866 = vmatpush2.msra.mxu0 0.0
      %867 = vmatprep.subr.mxu0 0.0
      %868 = vmatpush2.msra.mxu0 0.0
      %869 = vmatprep.subr.mxu0 0.0
      %870 = vmatpush2.msra.mxu0 0.0
      %871 = vmatprep.subr.mxu0 0.0
      %872 = vmatpush2.msra.mxu0 0.0
      %873 = vmatprep.subr.mxu0 0.0
      %874 = vmatpush2.msra.mxu0 0.0
      %875 = vmatprep.subr.mxu0 0.0
      %876 = vmatpush2.msra.mxu0 0.0
      %877 = vmatprep.subr.mxu0 0.0
      %878 = vmatpush2.msra.mxu0 0.0
      %879 = vmatprep.subr.mxu0 0.0
      %880 = vmatpush2.msra.mxu0 0.0
      %881 = vmatprep.subr.mxu0 0.0
      %882 = vmatpush2.msra.mxu0 0.0
      %883 = vmatprep.mubr.f32.mxu0 0.0
      %v884 = vand.u32 %v499, 4294901760
      %v885 = vsub.f32 %v499, %v884
      %v886 = vand.u32 %v885, 4294901760
      %887 = vmatmul.mubr.f32.gmra.mxu0 %v886
      %v888 = vpop.f32.mrf.mxu0
      %v889 = vadd.f32 %v805, %v888
      %v890 = vpop.f32.mrf.mxu0
      %v891 = vadd.f32 %v807, %v890
      %892 = vdwg.mxu0
      %893 = vmatprep.subr.mxu0 0.0
      %894 = vmatpush1.msra.mxu0 0.0
      %895 = vmatprep.subr.mxu0 0.0
      %896 = vmatpush1.msra.mxu0 0.0
      %897 = vmatprep.subr.mxu0 0.0
      %898 = vmatpush1.msra.mxu0 0.0
      %899 = vmatprep.subr.mxu0 0.0
      %900 = vmatpush1.msra.mxu0 0.0
      %901 = vmatprep.subr.mxu0 0.0
      %902 = vmatpush1.msra.mxu0 0.0
      %903 = vmatprep.subr.mxu0 0.0
      %904 = vmatpush1.msra.mxu0 0.0
      %905 = vmatprep.subr.mxu0 0.0
      %906 = vmatpush1.msra.mxu0 0.0
      %907 = vmatprep.subr.mxu0 0.0
      %908 = vmatpush1.msra.mxu0 0.0
      %909 = vmatprep.subr.mxu0 0.0
      %910 = vmatpush1.msra.mxu0 0.0
      %911 = vmatprep.subr.mxu0 0.0
      %912 = vmatpush1.msra.mxu0 0.0
      %913 = vmatprep.subr.mxu0 0.0
      %914 = vmatpush1.msra.mxu0 0.0
      %v915 = vand.u32 %v506, 4294901760
      %v916 = vsub.f32 %v506, %v915
      %v917 = vand.u32 %v916, 4294901760
      %918 = vmatprep.subr.mxu0 %v917
      %v919 = vand.u32 %v503, 4294901760
      %v920 = vsub.f32 %v503, %v919
      %v921 = vand.u32 %v920, 4294901760
      %922 = vmatpush1.msra.mxu0 %v921
      %v923 = vand.u32 %v495, 4294901760
      %v924 = vsub.f32 %v495, %v923
      %v925 = vand.u32 %v924, 4294901760
      %926 = vmatprep.subr.mxu0 %v925
      %v927 = vand.u32 %v494, 4294901760
      %v928 = vsub.f32 %v494, %v927
      %v929 = vand.u32 %v928, 4294901760
      %930 = vmatpush1.msra.mxu0 %v929
      %v931 = vand.u32 %v493, 4294901760
      %v932 = vsub.f32 %v493, %v931
      %v933 = vand.u32 %v932, 4294901760
      %934 = vmatprep.subr.mxu0 %v933
      %v935 = vand.u32 %v492, 4294901760
      %v936 = vsub.f32 %v492, %v935
      %v937 = vand.u32 %v936, 4294901760
      %938 = vmatpush1.msra.mxu0 %v937
      %v939 = vand.u32 %v491, 4294901760
      %v940 = vsub.f32 %v491, %v939
      %v941 = vand.u32 %v940, 4294901760
      %942 = vmatprep.subr.mxu0 %v941
      %v943 = vand.u32 %v490, 4294901760
      %v944 = vsub.f32 %v490, %v943
      %v945 = vand.u32 %v944, 4294901760
      %946 = vmatpush1.msra.mxu0 %v945
      %v947 = vand.u32 %v489, 4294901760
      %v948 = vsub.f32 %v489, %v947
      %v949 = vand.u32 %v948, 4294901760
      %950 = vmatprep.subr.mxu0 %v949
      %v951 = vand.u32 %v488, 4294901760
      %v952 = vsub.f32 %v488, %v951
      %v953 = vand.u32 %v952, 4294901760
      %954 = vmatpush1.msra.mxu0 %v953
      %955 = vmatprep.subr.mxu0 0.0
      %956 = vmatpush2.msra.mxu0 0.0
      %957 = vmatprep.subr.mxu0 0.0
      %958 = vmatpush2.msra.mxu0 0.0
      %959 = vmatprep.subr.mxu0 0.0
      %960 = vmatpush2.msra.mxu0 0.0
      %961 = vmatprep.subr.mxu0 0.0
      %962 = vmatpush2.msra.mxu0 0.0
      %963 = vmatprep.subr.mxu0 0.0
      %964 = vmatpush2.msra.mxu0 0.0
      %965 = vmatprep.subr.mxu0 0.0
      %966 = vmatpush2.msra.mxu0 0.0
      %967 = vmatprep.subr.mxu0 0.0
      %968 = vmatpush2.msra.mxu0 0.0
      %969 = vmatprep.subr.mxu0 0.0
      %970 = vmatpush2.msra.mxu0 0.0
      %971 = vmatprep.subr.mxu0 0.0
      %972 = vmatpush2.msra.mxu0 0.0
      %973 = vmatprep.subr.mxu0 0.0
      %974 = vmatpush2.msra.mxu0 0.0
      %975 = vmatprep.subr.mxu0 0.0
      %976 = vmatpush2.msra.mxu0 0.0
      %977 = vmatprep.subr.mxu0 0.0
      %978 = vmatpush2.msra.mxu0 0.0
      %979 = vmatprep.subr.mxu0 0.0
      %980 = vmatpush2.msra.mxu0 0.0
      %981 = vmatprep.subr.mxu0 0.0
      %982 = vmatpush2.msra.mxu0 0.0
      %983 = vmatprep.subr.mxu0 0.0
      %984 = vmatpush2.msra.mxu0 0.0
      %985 = vmatprep.subr.mxu0 0.0
      %986 = vmatpush2.msra.mxu0 0.0
      %987 = vmatprep.mubr.f32.mxu0 0.0
      %v988 = vand.u32 %v499, 4294901760
      %989 = vmatmul.mubr.f32.gmra.mxu0 %v988
      %v990 = vpop.f32.mrf.mxu0
      %v991 = vadd.f32 %v889, %v990
      %v992 = vpop.f32.mrf.mxu0
      %v993 = vadd.f32 %v891, %v992
      %994 = vdwg.mxu0
      %995 = vmatprep.subr.mxu0 0.0
      %996 = vmatpush1.msra.mxu0 0.0
      %997 = vmatprep.subr.mxu0 0.0
      %998 = vmatpush1.msra.mxu0 0.0
      %999 = vmatprep.subr.mxu0 0.0
      %1000 = vmatpush1.msra.mxu0 0.0
      %1001 = vmatprep.subr.mxu0 0.0
      %1002 = vmatpush1.msra.mxu0 0.0
      %1003 = vmatprep.subr.mxu0 0.0
      %1004 = vmatpush1.msra.mxu0 0.0
      %1005 = vmatprep.subr.mxu0 0.0
      %1006 = vmatpush1.msra.mxu0 0.0
      %1007 = vmatprep.subr.mxu0 0.0
      %1008 = vmatpush1.msra.mxu0 0.0
      %1009 = vmatprep.subr.mxu0 0.0
      %1010 = vmatpush1.msra.mxu0 0.0
      %1011 = vmatprep.subr.mxu0 0.0
      %1012 = vmatpush1.msra.mxu0 0.0
      %1013 = vmatprep.subr.mxu0 0.0
      %1014 = vmatpush1.msra.mxu0 0.0
      %1015 = vmatprep.subr.mxu0 0.0
      %1016 = vmatpush1.msra.mxu0 0.0
      %v1017 = vand.u32 %v506, 4294901760
      %1018 = vmatprep.subr.mxu0 %v1017
      %v1019 = vand.u32 %v503, 4294901760
      %1020 = vmatpush1.msra.mxu0 %v1019
      %v1021 = vand.u32 %v495, 4294901760
      %1022 = vmatprep.subr.mxu0 %v1021
      %v1023 = vand.u32 %v494, 4294901760
      %1024 = vmatpush1.msra.mxu0 %v1023
      %v1025 = vand.u32 %v493, 4294901760
      %1026 = vmatprep.subr.mxu0 %v1025
      %v1027 = vand.u32 %v492, 4294901760
      %1028 = vmatpush1.msra.mxu0 %v1027
      %v1029 = vand.u32 %v491, 4294901760
      %1030 = vmatprep.subr.mxu0 %v1029
      %v1031 = vand.u32 %v490, 4294901760
      %1032 = vmatpush1.msra.mxu0 %v1031
      %v1033 = vand.u32 %v489, 4294901760
      %1034 = vmatprep.subr.mxu0 %v1033
      %v1035 = vand.u32 %v488, 4294901760
      %1036 = vmatpush1.msra.mxu0 %v1035
      %1037 = vmatprep.subr.mxu0 0.0
      %1038 = vmatpush2.msra.mxu0 0.0
      %1039 = vmatprep.subr.mxu0 0.0
      %1040 = vmatpush2.msra.mxu0 0.0
      %1041 = vmatprep.subr.mxu0 0.0
      %1042 = vmatpush2.msra.mxu0 0.0
      %1043 = vmatprep.subr.mxu0 0.0
      %1044 = vmatpush2.msra.mxu0 0.0
      %1045 = vmatprep.subr.mxu0 0.0
      %1046 = vmatpush2.msra.mxu0 0.0
      %1047 = vmatprep.subr.mxu0 0.0
      %1048 = vmatpush2.msra.mxu0 0.0
      %1049 = vmatprep.subr.mxu0 0.0
      %1050 = vmatpush2.msra.mxu0 0.0
      %1051 = vmatprep.subr.mxu0 0.0
      %1052 = vmatpush2.msra.mxu0 0.0
      %1053 = vmatprep.subr.mxu0 0.0
      %1054 = vmatpush2.msra.mxu0 0.0
      %1055 = vmatprep.subr.mxu0 0.0
      %1056 = vmatpush2.msra.mxu0 0.0
      %1057 = vmatprep.subr.mxu0 0.0
      %1058 = vmatpush2.msra.mxu0 0.0
      %1059 = vmatprep.subr.mxu0 0.0
      %1060 = vmatpush2.msra.mxu0 0.0
      %1061 = vmatprep.subr.mxu0 0.0
      %1062 = vmatpush2.msra.mxu0 0.0
      %1063 = vmatprep.subr.mxu0 0.0
      %1064 = vmatpush2.msra.mxu0 0.0
      %1065 = vmatprep.subr.mxu0 0.0
      %1066 = vmatpush2.msra.mxu0 0.0
      %1067 = vmatprep.subr.mxu0 0.0
      %1068 = vmatpush2.msra.mxu0 0.0
      %1069 = vmatprep.mubr.f32.mxu0 0.0
      %v1070 = vand.u32 %v499, 4294901760
      %1071 = vmatmul.mubr.f32.gmra.mxu0 %v1070
      %v1072 = vpop.f32.mrf.mxu0
      %v1073 = vadd.f32 %v991, %v1072
      %v1074 = vpop.f32.mrf.mxu0
      %v1075 = vadd.f32 %v993, %v1074
      %1076 = vdwg.mxu0
      %v1077 = vmul.f32 %v1073, %v328
      %v1078 = vmul.f32 %v1075, %v328
      %v1079 = vld [vmem:[%s3] sm:$0xff]
      %1081 = vset.pattern.permute.xlu0 0
      %1082 = vperm.xlu0 %1081, %v1079
      %v1083 = vpop.permute.xlu0 %1082
      %v1085 = vadd.f32 %v1077, %v1083
      %v1086 = vadd.f32 %v1078, %v1083
      %1087 = vst [vmem:[%s246] sm:$0xff] %v1085
      %1088 = vst [vmem:[%s246 + $0x8] sm:$0xff] %v1086
      %p1089 = scmp.lt.s32.totalorder %s18, 1
      %s1090 = scalar_select %p1089, %s18, 1
      %s1091 = smul.addr %s1090, 2
      %s1092 = smul.addr %s1091, 8
      %s1093 = scalar_lea.vmem %s4, %s1092
      // Predicated region
      $region37: #{spectral_norm_conv_forward.1} parent=35 // pred_check
        %p1094 = pneg %p125
      $region38: #{spectral_norm_conv_forward.1} parent=35 // pred_check_branch
        %1096 = sbr.rel (%p1094) target = $region40
      $region39: #{spectral_norm_conv_forward.1} parent=35 // pred_region
        _
      $region40: #{spectral_norm_conv_forward.1} parent=35 // pred_fallthru
        _
      // Predicated region
      $region41: #{spectral_norm_conv_forward.1} parent=35 // pred_check
        %p1097 = pneg %p146
      $region42: #{spectral_norm_conv_forward.1} parent=35 // pred_check_branch
        %1099 = sbr.rel (%p1097) target = $region44
      $region43: #{spectral_norm_conv_forward.1} parent=35 // pred_region
        _
      $region44: #{spectral_norm_conv_forward.1} parent=35 // pred_fallthru
        _
      // Predicated region
      $region45: #{spectral_norm_conv_forward.1} parent=35 // pred_check
        %p1100 = pneg %p167
      $region46: #{spectral_norm_conv_forward.1} parent=35 // pred_check_branch
        %1102 = sbr.rel (%p1100) target = $region48
      $region47: #{spectral_norm_conv_forward.1} parent=35 // pred_region
        _
      $region48: #{spectral_norm_conv_forward.1} parent=35 // pred_fallthru
        _
      // Predicated region
      $region49: #{spectral_norm_conv_forward.1} parent=35 // pred_check
        %p1103 = pneg %p146
      $region50: #{spectral_norm_conv_forward.1} parent=35 // pred_check_branch
        %1105 = sbr.rel (%p1103) target = $region52
      $region51: #{spectral_norm_conv_forward.1} parent=35 // pred_region
        _
      $region52: #{spectral_norm_conv_forward.1} parent=35 // pred_fallthru
        _
      // Predicated region
      $region53: #{spectral_norm_conv_forward.1} parent=35 // pred_check
        %p1106 = pneg %p167
      $region54: #{spectral_norm_conv_forward.1} parent=35 // pred_check_branch
        %1108 = sbr.rel (%p1106) target = $region56
      $region55: #{spectral_norm_conv_forward.1} parent=35 // pred_region
        _
      $region56: #{spectral_norm_conv_forward.1} parent=35 // pred_fallthru
        _
    $region36: #{spectral_norm_conv_forward.1} parent=5 // pred_fallthru
      _
    %p1109 = scmp.le.s32.totalorder 2, %s13
    // Predicated region
    $region57: #{spectral_norm_conv_forward.1} parent=5 // pred_check
      %p1110 = pneg %p1109
    $region58: #{spectral_norm_conv_forward.1} parent=5 // pred_check_branch
      %1112 = sbr.rel (%p1110) target = $region60
    $region59: #{spectral_norm_conv_forward.1} parent=5 // pred_region
      %s1113 = ssub.s32 %s13, 2
      // Predicated region
      $region61: #{spectral_norm_conv_forward.1} parent=59 // pred_check
        %p1114 = pneg %p131
      $region62: #{spectral_norm_conv_forward.1} parent=59 // pred_check_branch
        %1116 = sbr.rel (%p1114) target = $region64
      $region63: #{spectral_norm_conv_forward.1} parent=59 // pred_region
        %p1117 = scmp.lt.s32.totalorder %s19, 1
        %s1118 = scalar_select %p1117, %s19, 1
        %s1119 = smul.addr %s1118, 2
        %s1120 = smul.addr %s1119, 8
        %s1121 = scalar_lea.vmem %s4, %s1120
      $region64: #{spectral_norm_conv_forward.1} parent=59 // pred_fallthru
        _
    $region60: #{spectral_norm_conv_forward.1} parent=5 // pred_fallthru
      _
  $region6: #{spectral_norm_conv_forward.1} parent=0 // loop_footer
    %s17 = sadd.s32 1, %s13
  $region7: #{spectral_norm_conv_forward.1} parent=0 // loop_footer_branch
    %12 = sbr.rel target = $region3
  $region8: #{spectral_norm_conv_forward.1} parent=0 // loop_exit
    _

</llo_original>
